<compile_context>
chip_gen: v7x
topology: tpu7x:2x2x1
jax: 0.10.0
libtpu: 0.0.40
codegen_flags: <defaults>
</compile_context>

<pallas_src>
import math

import jax
import jax.numpy as jnp
from jax.experimental import pallas as pl
from jax.experimental.pallas import tpu as pltpu

# ---------------- model dims (small, consistent with the module) -------------
B = 2        # batch
L = 8        # tgt_len (seq)
D = 32       # d_model
H = 4        # n_heads
DK = 8       # d_k
DV = 8       # d_v
DFF = 64     # d_ff
LN_EPS = 1e-5
E = 2 * DK + DV   # fused q|k|v feature width per head


def _layernorm(x, gamma, beta):
    mu = jnp.mean(x, axis=-1, keepdims=True)
    var = jnp.mean((x - mu) ** 2, axis=-1, keepdims=True)
    return (x - mu) * jax.lax.rsqrt(var + LN_EPS) * gamma + beta


def decoder_layer_kernel(x_ref, bias_ref,
                         wqkv_ref, wo_ref,
                         g1_ref, b1_ref,
                         w1_ref, w2_ref,
                         g2_ref, b2_ref,
                         out_ref, attn_ref):
    x = x_ref[...]                       # (B, L, D)
    bias = bias_ref[...]                 # (B, L, L) additive: 0 / -1e4

    # ---- fused, head-batched QKV projection ---------------------------------
    # x replicated over heads, per-head fused weight replicated over batch:
    # one batched matmul (B*H) x [(L, D) @ (D, 2*DK+DV)].
    x_n = jnp.broadcast_to(x[:, None], (B, H, L, D)).reshape(B * H, L, D)
    w_n = jnp.broadcast_to(wqkv_ref[...][None], (B, H, D, E)).reshape(B * H, D, E)
    qkv = jnp.einsum('nld,nde->nle', x_n, w_n,
                     preferred_element_type=jnp.float32)        # (B*H, L, E)

    q = qkv[..., 0:DK]                   # (B*H, L, DK)
    k = qkv[..., DK:2 * DK]              # (B*H, L, DK)
    v = qkv[..., 2 * DK:E]               # (B*H, L, DV)

    # ---- scaled dot-product attention (all batches & heads at once) ---------
    scores = jnp.einsum('nqd,nkd->nqk', q, k,
                        preferred_element_type=jnp.float32)
    scores = scores * jnp.float32(1.0 / math.sqrt(DK))
    scores = scores.reshape(B, H, L, L) + bias[:, None, :, :]   # (B, H, L, L)

    m = jnp.max(scores, axis=-1, keepdims=True)
    p = jnp.exp(scores - m)
    attn = p / jnp.sum(p, axis=-1, keepdims=True)               # (B, H, L, L)
    attn_ref[...] = attn                                        # single bulk store

    ctx = jnp.einsum('nqk,nkd->nqd', attn.reshape(B * H, L, L), v,
                     preferred_element_type=jnp.float32)        # (B*H, L, DV)

    # ---- output projection: per-head matmul, then sum over heads ------------
    wo_n = jnp.broadcast_to(wo_ref[...][None], (B, H, DV, D)).reshape(B * H, DV, D)
    proj = jnp.einsum('nld,nde->nle', ctx, wo_n,
                      preferred_element_type=jnp.float32)       # (B*H, L, D)
    attn_out = jnp.sum(proj.reshape(B, H, L, D), axis=1)        # (B, L, D)

    # ---- add & norm, feed-forward, add & norm (batch folded into M) ---------
    x2 = x.reshape(B * L, D)
    y = _layernorm(attn_out.reshape(B * L, D) + x2, g1_ref[...], b1_ref[...])

    hid = jnp.maximum(
        jnp.dot(y, w1_ref[...], preferred_element_type=jnp.float32), 0.0)
    ff = jnp.dot(hid, w2_ref[...], preferred_element_type=jnp.float32)

    out_ref[...] = _layernorm(ff + y, g2_ref[...], b2_ref[...]).reshape(B, L, D)


def decoder_layer(x, mask_f32, params):
    (wq, wk, wv, wo, g1, b1, w1, w2, g2, b2) = params

    # Wrapper-side (one-time) weight re-layout: per-head fused q|k|v slab and
    # per-head output projection.  Feature ordering matches torch's
    # .view(batch, -1, n_heads, d_k) convention (head-major columns).
    wq_h = wq.reshape(D, H, DK).transpose(1, 0, 2)        # (H, D, DK)
    wk_h = wk.reshape(D, H, DK).transpose(1, 0, 2)        # (H, D, DK)
    wv_h = wv.reshape(D, H, DV).transpose(1, 0, 2)        # (H, D, DV)
    wqkv = jnp.concatenate([wq_h, wk_h, wv_h], axis=-1)   # (H, D, 2*DK+DV)
    wo_h = wo.reshape(H, DV, D)                           # (H, DV, D)

    bias = mask_f32 * jnp.float32(-10000.0)               # additive mask bias

    vmem = pl.BlockSpec(memory_space=pltpu.MemorySpace.VMEM)
    inputs = (x, bias, wqkv, wo_h, g1, b1, w1, w2, g2, b2)

    return pl.pallas_call(
        decoder_layer_kernel,
        out_shape=(jax.ShapeDtypeStruct((B, L, D), jnp.float32),
                   jax.ShapeDtypeStruct((B, H, L, L), jnp.float32)),
        in_specs=[vmem] * len(inputs),
        out_specs=(vmem, vmem),
    )(*inputs)


# --------------------- pure-JAX reference (for sanity) -----------------------
def reference(x, mask_bool, params):
    (wq, wk, wv, wo, g1, b1, w1, w2, g2, b2) = params
    q = (x @ wq).reshape(B, L, H, DK).transpose(0, 2, 1, 3)
    k = (x @ wk).reshape(B, L, H, DK).transpose(0, 2, 1, 3)
    v = (x @ wv).reshape(B, L, H, DV).transpose(0, 2, 1, 3)
    scores = jnp.einsum("bhqd,bhkd->bhqk", q, k) / math.sqrt(DK)
    scores = jnp.where(mask_bool[:, None, :, :], -10000.0, scores)
    attn = jax.nn.softmax(scores, axis=-1)
    ctx = jnp.einsum("bhqk,bhkd->bhqd", attn, v)
    ctx = ctx.transpose(0, 2, 1, 3).reshape(B, L, H * DV)
    y = _layernorm(ctx @ wo + x, g1, b1)
    ff = jnp.maximum(y @ w1, 0.0) @ w2
    return _layernorm(ff + y, g2, b2), attn


if __name__ == "__main__":
    key = jax.random.PRNGKey(0)
    ks = jax.random.split(key, 10)

    x = jax.random.normal(ks[0], (B, L, D), dtype=jnp.float32)

    # causal-style boolean mask (True = masked), as the torch module expects
    mask_bool = jnp.triu(jnp.ones((L, L), dtype=bool), k=1)
    mask_bool = jnp.broadcast_to(mask_bool, (B, L, L))
    mask_f32 = mask_bool.astype(jnp.float32)

    def init(k, shape, fan_in):
        bound = 1.0 / math.sqrt(fan_in)
        return jax.random.uniform(k, shape, jnp.float32, -bound, bound)

    wq = init(ks[1], (D, H * DK), D)
    wk = init(ks[2], (D, H * DK), D)
    wv = init(ks[3], (D, H * DV), D)
    wo = init(ks[4], (H * DV, D), H * DV)
    g1 = jnp.ones((1, D), jnp.float32)
    b1 = jnp.zeros((1, D), jnp.float32)
    w1 = init(ks[5], (D, DFF), D)
    w2 = init(ks[6], (DFF, D), DFF)
    g2 = jnp.ones((1, D), jnp.float32)
    b2 = jnp.zeros((1, D), jnp.float32)

    params = (wq, wk, wv, wo, g1, b1, w1, w2, g2, b2)

    out, attn = decoder_layer(x, mask_f32, params)
    out = jax.block_until_ready(out)
    attn = jax.block_until_ready(attn)

    ref_out, ref_attn = reference(x, mask_bool, params)
    assert jnp.allclose(out, ref_out, atol=1e-4, rtol=1e-4)
    assert jnp.allclose(attn, ref_attn, atol=1e-4, rtol=1e-4)

    print("KERNEL_OK")
</pallas_src>

<mosaic_0001>
module attributes {stable_mosaic.version = 11 : i64} {
  func.func @decoder_layer_kernel(%arg0: memref<2x8x32xf32, #tpu.memory_space<vmem>>, %arg1: memref<2x8x8xf32, #tpu.memory_space<vmem>>, %arg2: memref<4x32x24xf32, #tpu.memory_space<vmem>>, %arg3: memref<4x8x32xf32, #tpu.memory_space<vmem>>, %arg4: memref<1x32xf32, #tpu.memory_space<vmem>>, %arg5: memref<1x32xf32, #tpu.memory_space<vmem>>, %arg6: memref<32x64xf32, #tpu.memory_space<vmem>>, %arg7: memref<64x32xf32, #tpu.memory_space<vmem>>, %arg8: memref<1x32xf32, #tpu.memory_space<vmem>>, %arg9: memref<1x32xf32, #tpu.memory_space<vmem>>, %arg10: memref<2x8x32xf32, #tpu.memory_space<vmem>>, %arg11: memref<2x4x8x8xf32, #tpu.memory_space<vmem>>) attributes {dimension_semantics = [], scalar_prefetch = 0 : i64, scratch_operands = 0 : i64, tpu.core_type = #tpu.core_type<tc>} {
    %c0 = arith.constant 0 : index
    %c0_0 = arith.constant 0 : index
    %c0_1 = arith.constant 0 : index
    %0 = vector.load %arg0[%c0, %c0_0, %c0_1] : memref<2x8x32xf32, #tpu.memory_space<vmem>>, vector<2x8x32xf32>
    %c0_2 = arith.constant 0 : index
    %c0_3 = arith.constant 0 : index
    %c0_4 = arith.constant 0 : index
    %1 = vector.load %arg1[%c0_2, %c0_3, %c0_4] : memref<2x8x8xf32, #tpu.memory_space<vmem>>, vector<2x8x8xf32>
    %2 = vector.shape_cast %0 : vector<2x8x32xf32> to vector<2x1x8x32xf32>
    %3 = vector.shape_cast %2 : vector<2x1x8x32xf32> to vector<2x1x8x32xf32>
    %4 = vector.broadcast %3 : vector<2x1x8x32xf32> to vector<2x4x8x32xf32>
    %5 = vector.shape_cast %4 : vector<2x4x8x32xf32> to vector<8x8x32xf32>
    %c0_5 = arith.constant 0 : index
    %c0_6 = arith.constant 0 : index
    %c0_7 = arith.constant 0 : index
    %6 = vector.load %arg2[%c0_5, %c0_6, %c0_7] : memref<4x32x24xf32, #tpu.memory_space<vmem>>, vector<4x32x24xf32>
    %7 = vector.shape_cast %6 : vector<4x32x24xf32> to vector<1x4x32x24xf32>
    %8 = vector.shape_cast %7 : vector<1x4x32x24xf32> to vector<1x4x32x24xf32>
    %9 = vector.broadcast %8 : vector<1x4x32x24xf32> to vector<2x4x32x24xf32>
    %10 = vector.shape_cast %9 : vector<2x4x32x24xf32> to vector<8x32x24xf32>
    "tpu.trace_start"() <{level = 10 : i32, message = "nld,nde->nle"}> : () -> ()
    %cst = arith.constant dense<0.000000e+00> : vector<8x8x24xf32>
    %11 = tpu.matmul %5, %10, %cst {dimension_numbers = #tpu.dot_dimension_numbers<[2], [1], [1], [2], [0, 0, 0, 1, 1, 2], [0], [0]>} : vector<8x8x32xf32>, vector<8x32x24xf32>, vector<8x8x24xf32> -> vector<8x8x24xf32>
    "tpu.trace_stop"() : () -> ()
    %12 = vector.extract_strided_slice %11 {offsets = [0, 0, 0], sizes = [8, 8, 8], strides = [1, 1, 1]} : vector<8x8x24xf32> to vector<8x8x8xf32>
    %13 = vector.extract_strided_slice %11 {offsets = [0, 0, 8], sizes = [8, 8, 8], strides = [1, 1, 1]} : vector<8x8x24xf32> to vector<8x8x8xf32>
    %14 = vector.extract_strided_slice %11 {offsets = [0, 0, 16], sizes = [8, 8, 8], strides = [1, 1, 1]} : vector<8x8x24xf32> to vector<8x8x8xf32>
    "tpu.trace_start"() <{level = 10 : i32, message = "nqd,nkd->nqk"}> : () -> ()
    %cst_8 = arith.constant dense<0.000000e+00> : vector<8x8x8xf32>
    %15 = tpu.matmul %12, %13, %cst_8 {dimension_numbers = #tpu.dot_dimension_numbers<[2], [2], [1], [1], [0, 0, 0, 1, 1, 1], [0], [0]>} : vector<8x8x8xf32>, vector<8x8x8xf32>, vector<8x8x8xf32> -> vector<8x8x8xf32>
    "tpu.trace_stop"() : () -> ()
    %cst_9 = arith.constant 0.353553385 : f32
    %16 = vector.broadcast %cst_9 : f32 to vector<8x8x8xf32>
    %17 = arith.mulf %15, %16 : vector<8x8x8xf32>
    %18 = vector.shape_cast %17 : vector<8x8x8xf32> to vector<2x4x8x8xf32>
    %19 = vector.shape_cast %1 : vector<2x8x8xf32> to vector<2x1x8x8xf32>
    %20 = vector.broadcast %19 : vector<2x1x8x8xf32> to vector<2x4x8x8xf32>
    %21 = arith.addf %18, %20 : vector<2x4x8x8xf32>
    %cst_10 = arith.constant dense<0xFF800000> : vector<2x4x8xf32>
    %22 = vector.multi_reduction <maximumf>, %21, %cst_10 [3] : vector<2x4x8x8xf32> to vector<2x4x8xf32>
    %23 = vector.shape_cast %22 : vector<2x4x8xf32> to vector<2x4x8x1xf32>
    %24 = vector.broadcast %23 : vector<2x4x8x1xf32> to vector<2x4x8x8xf32>
    %25 = arith.subf %21, %24 : vector<2x4x8x8xf32>
    %26 = math.exp %25 : vector<2x4x8x8xf32>
    %cst_11 = arith.constant dense<0.000000e+00> : vector<2x4x8xf32>
    %27 = vector.multi_reduction <add>, %26, %cst_11 [3] : vector<2x4x8x8xf32> to vector<2x4x8xf32>
    %28 = vector.shape_cast %27 : vector<2x4x8xf32> to vector<2x4x8x1xf32>
    %29 = vector.broadcast %28 : vector<2x4x8x1xf32> to vector<2x4x8x8xf32>
    %30 = arith.divf %26, %29 : vector<2x4x8x8xf32>
    %c0_12 = arith.constant 0 : index
    %c0_13 = arith.constant 0 : index
    %c0_14 = arith.constant 0 : index
    %c0_15 = arith.constant 0 : index
    %31 = vector.load %arg11[%c0_12, %c0_13, %c0_14, %c0_15] : memref<2x4x8x8xf32, #tpu.memory_space<vmem>>, vector<2x4x8x8xf32>
    tpu.vector_store %arg11[%c0_12, %c0_13, %c0_14, %c0_15], %30 {strides = array<i32>} : memref<2x4x8x8xf32, #tpu.memory_space<vmem>>, vector<2x4x8x8xf32>,
    %32 = vector.shape_cast %30 : vector<2x4x8x8xf32> to vector<8x8x8xf32>
    "tpu.trace_start"() <{level = 10 : i32, message = "nqk,nkd->nqd"}> : () -> ()
    %cst_16 = arith.constant dense<0.000000e+00> : vector<8x8x8xf32>
    %33 = tpu.matmul %32, %14, %cst_16 {dimension_numbers = #tpu.dot_dimension_numbers<[2], [1], [1], [2], [0, 0, 0, 1, 1, 2], [0], [0]>} : vector<8x8x8xf32>, vector<8x8x8xf32>, vector<8x8x8xf32> -> vector<8x8x8xf32>
    "tpu.trace_stop"() : () -> ()
    %c0_17 = arith.constant 0 : index
    %c0_18 = arith.constant 0 : index
    %c0_19 = arith.constant 0 : index
    %34 = vector.load %arg3[%c0_17, %c0_18, %c0_19] : memref<4x8x32xf32, #tpu.memory_space<vmem>>, vector<4x8x32xf32>
    %35 = vector.shape_cast %34 : vector<4x8x32xf32> to vector<1x4x8x32xf32>
    %36 = vector.shape_cast %35 : vector<1x4x8x32xf32> to vector<1x4x8x32xf32>
    %37 = vector.broadcast %36 : vector<1x4x8x32xf32> to vector<2x4x8x32xf32>
    %38 = vector.shape_cast %37 : vector<2x4x8x32xf32> to vector<8x8x32xf32>
    "tpu.trace_start"() <{level = 10 : i32, message = "nld,nde->nle"}> : () -> ()
    %cst_20 = arith.constant dense<0.000000e+00> : vector<8x8x32xf32>
    %39 = tpu.matmul %33, %38, %cst_20 {dimension_numbers = #tpu.dot_dimension_numbers<[2], [1], [1], [2], [0, 0, 0, 1, 1, 2], [0], [0]>} : vector<8x8x8xf32>, vector<8x8x32xf32>, vector<8x8x32xf32> -> vector<8x8x32xf32>
    "tpu.trace_stop"() : () -> ()
    %40 = vector.shape_cast %39 : vector<8x8x32xf32> to vector<2x4x8x32xf32>
    %cst_21 = arith.constant dense<0.000000e+00> : vector<2x8x32xf32>
    %41 = vector.multi_reduction <add>, %40, %cst_21 [1] : vector<2x4x8x32xf32> to vector<2x8x32xf32>
    %42 = vector.shape_cast %0 : vector<2x8x32xf32> to vector<16x32xf32>
    %43 = vector.shape_cast %41 : vector<2x8x32xf32> to vector<16x32xf32>
    %44 = arith.addf %43, %42 : vector<16x32xf32>
    %c0_22 = arith.constant 0 : index
    %c0_23 = arith.constant 0 : index
    %45 = vector.load %arg4[%c0_22, %c0_23] : memref<1x32xf32, #tpu.memory_space<vmem>>, vector<1x32xf32>
    %c0_24 = arith.constant 0 : index
    %c0_25 = arith.constant 0 : index
    %46 = vector.load %arg5[%c0_24, %c0_25] : memref<1x32xf32, #tpu.memory_space<vmem>>, vector<1x32xf32>
    %cst_26 = arith.constant dense<0.000000e+00> : vector<16xf32>
    %47 = vector.multi_reduction <add>, %44, %cst_26 [1] : vector<16x32xf32> to vector<16xf32>
    %48 = vector.shape_cast %47 : vector<16xf32> to vector<16x1xf32>
    %cst_27 = arith.constant 3.200000e+01 : f32
    %49 = vector.broadcast %cst_27 : f32 to vector<16x1xf32>
    %50 = arith.divf %48, %49 : vector<16x1xf32>
    %51 = vector.broadcast %50 : vector<16x1xf32> to vector<16x32xf32>
    %52 = arith.subf %44, %51 : vector<16x32xf32>
    %53 = arith.mulf %52, %52 : vector<16x32xf32>
    %cst_28 = arith.constant dense<0.000000e+00> : vector<16xf32>
    %54 = vector.multi_reduction <add>, %53, %cst_28 [1] : vector<16x32xf32> to vector<16xf32>
    %55 = vector.shape_cast %54 : vector<16xf32> to vector<16x1xf32>
    %cst_29 = arith.constant 3.200000e+01 : f32
    %56 = vector.broadcast %cst_29 : f32 to vector<16x1xf32>
    %57 = arith.divf %55, %56 : vector<16x1xf32>
    %58 = vector.broadcast %50 : vector<16x1xf32> to vector<16x32xf32>
    %59 = arith.subf %44, %58 : vector<16x32xf32>
    %cst_30 = arith.constant 9.99999974E-6 : f32
    %60 = vector.broadcast %cst_30 : f32 to vector<16x1xf32>
    %61 = arith.addf %57, %60 : vector<16x1xf32>
    %62 = math.rsqrt %61 : vector<16x1xf32>
    %63 = vector.broadcast %62 : vector<16x1xf32> to vector<16x32xf32>
    %64 = arith.mulf %59, %63 : vector<16x32xf32>
    %65 = vector.broadcast %45 : vector<1x32xf32> to vector<16x32xf32>
    %66 = arith.mulf %64, %65 : vector<16x32xf32>
    %67 = vector.broadcast %46 : vector<1x32xf32> to vector<16x32xf32>
    %68 = arith.addf %66, %67 : vector<16x32xf32>
    %c0_31 = arith.constant 0 : index
    %c0_32 = arith.constant 0 : index
    %69 = vector.load %arg6[%c0_31, %c0_32] : memref<32x64xf32, #tpu.memory_space<vmem>>, vector<32x64xf32>
    %cst_33 = arith.constant dense<0.000000e+00> : vector<16x64xf32>
    %70 = tpu.matmul %68, %69, %cst_33 {dimension_numbers = #tpu.dot_dimension_numbers<[1], [0], [0], [1], [0, 0, 1, 1], [], []>} : vector<16x32xf32>, vector<32x64xf32>, vector<16x64xf32> -> vector<16x64xf32>
    %cst_34 = arith.constant 0.000000e+00 : f32
    %71 = vector.broadcast %cst_34 : f32 to vector<16x64xf32>
    %72 = arith.maximumf %70, %71 : vector<16x64xf32>
    %c0_35 = arith.constant 0 : index
    %c0_36 = arith.constant 0 : index
    %73 = vector.load %arg7[%c0_35, %c0_36] : memref<64x32xf32, #tpu.memory_space<vmem>>, vector<64x32xf32>
    %cst_37 = arith.constant dense<0.000000e+00> : vector<16x32xf32>
    %74 = tpu.matmul %72, %73, %cst_37 {dimension_numbers = #tpu.dot_dimension_numbers<[1], [0], [0], [1], [0, 0, 1, 1], [], []>} : vector<16x64xf32>, vector<64x32xf32>, vector<16x32xf32> -> vector<16x32xf32>
    %75 = arith.addf %74, %68 : vector<16x32xf32>
    %c0_38 = arith.constant 0 : index
    %c0_39 = arith.constant 0 : index
    %76 = vector.load %arg8[%c0_38, %c0_39] : memref<1x32xf32, #tpu.memory_space<vmem>>, vector<1x32xf32>
    %c0_40 = arith.constant 0 : index
    %c0_41 = arith.constant 0 : index
    %77 = vector.load %arg9[%c0_40, %c0_41] : memref<1x32xf32, #tpu.memory_space<vmem>>, vector<1x32xf32>
    %cst_42 = arith.constant dense<0.000000e+00> : vector<16xf32>
    %78 = vector.multi_reduction <add>, %75, %cst_42 [1] : vector<16x32xf32> to vector<16xf32>
    %79 = vector.shape_cast %78 : vector<16xf32> to vector<16x1xf32>
    %cst_43 = arith.constant 3.200000e+01 : f32
    %80 = vector.broadcast %cst_43 : f32 to vector<16x1xf32>
    %81 = arith.divf %79, %80 : vector<16x1xf32>
    %82 = vector.broadcast %81 : vector<16x1xf32> to vector<16x32xf32>
    %83 = arith.subf %75, %82 : vector<16x32xf32>
    %84 = arith.mulf %83, %83 : vector<16x32xf32>
    %cst_44 = arith.constant dense<0.000000e+00> : vector<16xf32>
    %85 = vector.multi_reduction <add>, %84, %cst_44 [1] : vector<16x32xf32> to vector<16xf32>
    %86 = vector.shape_cast %85 : vector<16xf32> to vector<16x1xf32>
    %cst_45 = arith.constant 3.200000e+01 : f32
    %87 = vector.broadcast %cst_45 : f32 to vector<16x1xf32>
    %88 = arith.divf %86, %87 : vector<16x1xf32>
    %89 = vector.broadcast %81 : vector<16x1xf32> to vector<16x32xf32>
    %90 = arith.subf %75, %89 : vector<16x32xf32>
    %cst_46 = arith.constant 9.99999974E-6 : f32
    %91 = vector.broadcast %cst_46 : f32 to vector<16x1xf32>
    %92 = arith.addf %88, %91 : vector<16x1xf32>
    %93 = math.rsqrt %92 : vector<16x1xf32>
    %94 = vector.broadcast %93 : vector<16x1xf32> to vector<16x32xf32>
    %95 = arith.mulf %90, %94 : vector<16x32xf32>
    %96 = vector.broadcast %76 : vector<1x32xf32> to vector<16x32xf32>
    %97 = arith.mulf %95, %96 : vector<16x32xf32>
    %98 = vector.broadcast %77 : vector<1x32xf32> to vector<16x32xf32>
    %99 = arith.addf %97, %98 : vector<16x32xf32>
    %100 = vector.shape_cast %99 : vector<16x32xf32> to vector<2x8x32xf32>
    %c0_47 = arith.constant 0 : index
    %c0_48 = arith.constant 0 : index
    %c0_49 = arith.constant 0 : index
    %101 = vector.load %arg10[%c0_47, %c0_48, %c0_49] : memref<2x8x32xf32, #tpu.memory_space<vmem>>, vector<2x8x32xf32>
    tpu.vector_store %arg10[%c0_47, %c0_48, %c0_49], %100 {strides = array<i32>} : memref<2x8x32xf32, #tpu.memory_space<vmem>>, vector<2x8x32xf32>,
    return
  }
}

</mosaic_0001>

<llo_original>
// kernel: tpu_custom_call.1
$region0: #{tpu_custom_call.1}
  #allocation0 [shape = 'u32[]', space=smem, size = 0x4, offset = 0x4, fixed_abs, tag = 'smem constant byte address 0x4 - core index']
  #allocation1 [shape = 'u32[144,128]{1,0:T(1,128)}', space=vmem, size = 0x12000, scoped, tag = 'internal scratch']
  %s0 = inlined_call_operand.vmem [shape: f32[2,8,32], index: 0, kind: input, shape index: {}]
  %s1 = inlined_call_operand.vmem [shape: f32[2,8,8], index: 1, kind: input, shape index: {}]
  %s2 = inlined_call_operand.vmem [shape: f32[4,32,24], index: 2, kind: input, shape index: {}]
  %s3 = inlined_call_operand.vmem [shape: f32[4,8,32], index: 3, kind: input, shape index: {}]
  %s4 = inlined_call_operand.vmem [shape: f32[1,32], index: 4, kind: input, shape index: {}]
  %s5 = inlined_call_operand.vmem [shape: f32[1,32], index: 5, kind: input, shape index: {}]
  %s6 = inlined_call_operand.vmem [shape: f32[32,64], index: 6, kind: input, shape index: {}]
  %s7 = inlined_call_operand.vmem [shape: f32[64,32], index: 7, kind: input, shape index: {}]
  %s8 = inlined_call_operand.vmem [shape: f32[1,32], index: 8, kind: input, shape index: {}]
  %s9 = inlined_call_operand.vmem [shape: f32[1,32], index: 9, kind: input, shape index: {}]
  %s10 = inlined_call_operand.hbm [shape: f32[2,8,32], index: 10, kind: output, shape index: {0}]
  %s11 = inlined_call_operand.hbm [shape: f32[2,4,8,8], index: 11, kind: output, shape index: {1}]
  %12 = xla_tuple %s10, %s11
  %s13 = sld [smem:[#allocation0]]
  $region58: #{tpu_custom_call.1} parent=0
    _
  %s15 = ssub.s32 1, %s13
  %s16 = scalar_select 0, %s15, %s13
  $region1: #{tpu_custom_call.1} parent=0
    #allocation2 [shape = 'u8[8192]{0}', space=vmem, size = 0x2000, scoped, tag = 'output window, operand 0, single buffered']
    #allocation3 [shape = 's32[1]{0}', space=sflag, size = 0x4, scoped, tag = 'scoped memory for tpu_custom_call.1']
    #allocation4 [shape = 'u8[32768]{0}', space=vmem, size = 0x8000, scoped, tag = 'output window, operand 1, single buffered']
    #allocation5 [shape = 's32[1]{0}', space=sflag, size = 0x4, scoped, tag = 'scoped memory for tpu_custom_call.1']
    %17 = vsyncpa [#allocation3], 0
    %18 = vsyncpa [#allocation5], 0
    // Predicated region
    $region2: #{tpu_custom_call.1} parent=1 // pred_check
      _
    $region3: #{tpu_custom_call.1} parent=1 // pred_check_branch
      %20 = sbr.rel (0) target = $region5
    $region4: #{tpu_custom_call.1} parent=1 // pred_region
      _
    $region5: #{tpu_custom_call.1} parent=1 // pred_fallthru
      _
    // Predicated region
    $region6: #{tpu_custom_call.1} parent=1 // pred_check
      _
    $region7: #{tpu_custom_call.1} parent=1 // pred_check_branch
      %22 = sbr.rel (0) target = $region9
    $region8: #{tpu_custom_call.1} parent=1 // pred_region
      _
    $region9: #{tpu_custom_call.1} parent=1 // pred_fallthru
      _
    // Predicated region
    $region10: #{tpu_custom_call.1} parent=1 // pred_check
      _
    $region11: #{tpu_custom_call.1} parent=1 // pred_check_branch
      %24 = sbr.rel (0) target = $region13
    $region12: #{tpu_custom_call.1} parent=1 // pred_region
      _
    $region13: #{tpu_custom_call.1} parent=1 // pred_fallthru
      _
    // Predicated region
    $region14: #{tpu_custom_call.1} parent=1 // pred_check
      _
    $region15: #{tpu_custom_call.1} parent=1 // pred_check_branch
      %26 = sbr.rel (0) target = $region17
    $region16: #{tpu_custom_call.1} parent=1 // pred_region
      _
    $region17: #{tpu_custom_call.1} parent=1 // pred_fallthru
      _
    // Predicated region
    $region18: #{tpu_custom_call.1} parent=1 // pred_check
      _
    $region19: #{tpu_custom_call.1} parent=1 // pred_check_branch
      %28 = sbr.rel (0) target = $region21
    $region20: #{tpu_custom_call.1} parent=1 // pred_region
      _
    $region21: #{tpu_custom_call.1} parent=1 // pred_fallthru
      _
    // Predicated region
    $region22: #{tpu_custom_call.1} parent=1 // pred_check
      _
    $region23: #{tpu_custom_call.1} parent=1 // pred_check_branch
      %30 = sbr.rel (0) target = $region25
    $region24: #{tpu_custom_call.1} parent=1 // pred_region
      _
    $region25: #{tpu_custom_call.1} parent=1 // pred_fallthru
      _
    // Predicated region
    $region26: #{tpu_custom_call.1} parent=1 // pred_check
      _
    $region27: #{tpu_custom_call.1} parent=1 // pred_check_branch
      %32 = sbr.rel (0) target = $region29
    $region28: #{tpu_custom_call.1} parent=1 // pred_region
      _
    $region29: #{tpu_custom_call.1} parent=1 // pred_fallthru
      _
    // Predicated region
    $region30: #{tpu_custom_call.1} parent=1 // pred_check
      _
    $region31: #{tpu_custom_call.1} parent=1 // pred_check_branch
      %34 = sbr.rel (0) target = $region33
    $region32: #{tpu_custom_call.1} parent=1 // pred_region
      _
    $region33: #{tpu_custom_call.1} parent=1 // pred_fallthru
      _
    // Predicated region
    $region34: #{tpu_custom_call.1} parent=1 // pred_check
      _
    $region35: #{tpu_custom_call.1} parent=1 // pred_check_branch
      %36 = sbr.rel (0) target = $region37
    $region36: #{tpu_custom_call.1} parent=1 // pred_region
      _
    $region37: #{tpu_custom_call.1} parent=1 // pred_fallthru
      _
    // Predicated region
    $region38: #{tpu_custom_call.1} parent=1 // pred_check
      _
    $region39: #{tpu_custom_call.1} parent=1 // pred_check_branch
      %38 = sbr.rel (0) target = $region41
    $region40: #{tpu_custom_call.1} parent=1 // pred_region
      _
    $region41: #{tpu_custom_call.1} parent=1 // pred_fallthru
      _
    %v39 = vld [vmem:[%s0] sm:$0xff]
    %v40 = vld [vmem:[%s0 + $0x8] sm:$0xff]
    %v41 = vld [vmem:[%s1] sm:$0xff]
    %v42 = vld [vmem:[%s1 + $0x8] sm:$0xff]
    %v43 = vld [vmem:[%s2] sm:$0xff]
    %v44 = vld [vmem:[%s2 + $0x8] sm:$0xff]
    %v45 = vld [vmem:[%s2 + $0x10] sm:$0xff]
    %v46 = vld [vmem:[%s2 + $0x18] sm:$0xff]
    %v47 = vld [vmem:[%s2 + $0x20] sm:$0xff]
    %v48 = vld [vmem:[%s2 + $0x28] sm:$0xff]
    %v49 = vld [vmem:[%s2 + $0x30] sm:$0xff]
    %v50 = vld [vmem:[%s2 + $0x38] sm:$0xff]
    %v51 = vld [vmem:[%s2 + $0x40] sm:$0xff]
    %v52 = vld [vmem:[%s2 + $0x48] sm:$0xff]
    %v53 = vld [vmem:[%s2 + $0x50] sm:$0xff]
    %v54 = vld [vmem:[%s2 + $0x58] sm:$0xff]
    %v55 = vld [vmem:[%s2 + $0x60] sm:$0xff]
    %v56 = vld [vmem:[%s2 + $0x68] sm:$0xff]
    %v57 = vld [vmem:[%s2 + $0x70] sm:$0xff]
    %v58 = vld [vmem:[%s2 + $0x78] sm:$0xff]
    %vm59 = vcmask 261120
    %v61 = vsel %vm59, %v39, 0
    %63 = vmatprep.subr.mxu0 0.0
    %64 = vmatpush1.msra.mxu0 %v43
    %65 = vmatprep.subr.mxu0 0.0
    %66 = vmatpush1.msra.mxu0 %v44
    %67 = vmatprep.subr.mxu0 0.0
    %68 = vmatpush1.msra.mxu0 %v45
    %69 = vmatprep.subr.mxu0 0.0
    %70 = vmatpush1.msra.mxu0 %v46
    %71 = vmatprep.subr.mxu0 0.0
    %72 = vmatpush1.msra.mxu0 0.0
    %73 = vmatprep.subr.mxu0 0.0
    %74 = vmatpush1.msra.mxu0 0.0
    %75 = vmatprep.subr.mxu0 0.0
    %76 = vmatpush1.msra.mxu0 0.0
    %77 = vmatprep.subr.mxu0 0.0
    %78 = vmatpush1.msra.mxu0 0.0
    %79 = vmatprep.subr.mxu0 0.0
    %80 = vmatpush1.msra.mxu0 0.0
    %81 = vmatprep.subr.mxu0 0.0
    %82 = vmatpush1.msra.mxu0 0.0
    %83 = vmatprep.subr.mxu0 0.0
    %84 = vmatpush1.msra.mxu0 0.0
    %85 = vmatprep.subr.mxu0 0.0
    %86 = vmatpush1.msra.mxu0 0.0
    %87 = vmatprep.subr.mxu0 0.0
    %88 = vmatpush1.msra.mxu0 0.0
    %89 = vmatprep.subr.mxu0 0.0
    %90 = vmatpush1.msra.mxu0 0.0
    %91 = vmatprep.subr.mxu0 0.0
    %92 = vmatpush1.msra.mxu0 0.0
    %93 = vmatprep.subr.mxu0 0.0
    %94 = vmatpush1.msra.mxu0 0.0
    %95 = vmatprep.subr.mxu0 0.0
    %96 = vmatpush1.msra.mxu0 0.0
    %97 = vmatprep.subr.mxu0 0.0
    %98 = vmatpush1.msra.mxu0 0.0
    %99 = vmatprep.subr.mxu0 0.0
    %100 = vmatpush1.msra.mxu0 0.0
    %101 = vmatprep.subr.mxu0 0.0
    %102 = vmatpush1.msra.mxu0 0.0
    %103 = vmatprep.subr.mxu0 0.0
    %104 = vmatpush1.msra.mxu0 0.0
    %105 = vmatprep.subr.mxu0 0.0
    %106 = vmatpush1.msra.mxu0 0.0
    %107 = vmatprep.subr.mxu0 0.0
    %108 = vmatpush1.msra.mxu0 0.0
    %109 = vmatprep.subr.mxu0 0.0
    %110 = vmatpush1.msra.mxu0 0.0
    %111 = vmatprep.subr.mxu0 0.0
    %112 = vmatpush1.msra.mxu0 0.0
    %113 = vmatprep.subr.mxu0 0.0
    %114 = vmatpush1.msra.mxu0 0.0
    %115 = vmatprep.subr.mxu0 0.0
    %116 = vmatpush1.msra.mxu0 0.0
    %117 = vmatprep.subr.mxu0 0.0
    %118 = vmatpush1.msra.mxu0 0.0
    %119 = vmatprep.subr.mxu0 0.0
    %120 = vmatpush1.msra.mxu0 0.0
    %121 = vmatprep.subr.mxu0 0.0
    %122 = vmatpush1.msra.mxu0 0.0
    %123 = vmatprep.subr.mxu0 0.0
    %124 = vmatpush1.msra.mxu0 0.0
    %125 = vmatprep.subr.mxu0 0.0
    %126 = vmatpush1.msra.mxu0 0.0
    %127 = vmatprep.mubr.f32.mxu0 0.0
    %128 = vmatmul.mubr.f32.gmra.mrb[0].mxu0 %v61
    %v129 = vpop.f32.mrb[0].mxu0
    %v130 = vadd.f32 0.0, %v129
    %v131 = vpop.f32.mrb[0].mxu0
    %132 = vdwg.mxu0
    %133 = vmatprep.subr.mxu0 0.0
    %134 = vmatpush1.msra.mxu0 %v47
    %135 = vmatprep.subr.mxu0 0.0
    %136 = vmatpush1.msra.mxu0 %v48
    %137 = vmatprep.subr.mxu0 0.0
    %138 = vmatpush1.msra.mxu0 %v49
    %139 = vmatprep.subr.mxu0 0.0
    %140 = vmatpush1.msra.mxu0 %v50
    %141 = vmatprep.subr.mxu0 0.0
    %142 = vmatpush1.msra.mxu0 0.0
    %143 = vmatprep.subr.mxu0 0.0
    %144 = vmatpush1.msra.mxu0 0.0
    %145 = vmatprep.subr.mxu0 0.0
    %146 = vmatpush1.msra.mxu0 0.0
    %147 = vmatprep.subr.mxu0 0.0
    %148 = vmatpush1.msra.mxu0 0.0
    %149 = vmatprep.subr.mxu0 0.0
    %150 = vmatpush1.msra.mxu0 0.0
    %151 = vmatprep.subr.mxu0 0.0
    %152 = vmatpush1.msra.mxu0 0.0
    %153 = vmatprep.subr.mxu0 0.0
    %154 = vmatpush1.msra.mxu0 0.0
    %155 = vmatprep.subr.mxu0 0.0
    %156 = vmatpush1.msra.mxu0 0.0
    %157 = vmatprep.subr.mxu0 0.0
    %158 = vmatpush1.msra.mxu0 0.0
    %159 = vmatprep.subr.mxu0 0.0
    %160 = vmatpush1.msra.mxu0 0.0
    %161 = vmatprep.subr.mxu0 0.0
    %162 = vmatpush1.msra.mxu0 0.0
    %163 = vmatprep.subr.mxu0 0.0
    %164 = vmatpush1.msra.mxu0 0.0
    %165 = vmatprep.subr.mxu0 0.0
    %166 = vmatpush1.msra.mxu0 0.0
    %167 = vmatprep.subr.mxu0 0.0
    %168 = vmatpush1.msra.mxu0 0.0
    %169 = vmatprep.subr.mxu0 0.0
    %170 = vmatpush1.msra.mxu0 0.0
    %171 = vmatprep.subr.mxu0 0.0
    %172 = vmatpush1.msra.mxu0 0.0
    %173 = vmatprep.subr.mxu0 0.0
    %174 = vmatpush1.msra.mxu0 0.0
    %175 = vmatprep.subr.mxu0 0.0
    %176 = vmatpush1.msra.mxu0 0.0
    %177 = vmatprep.subr.mxu0 0.0
    %178 = vmatpush1.msra.mxu0 0.0
    %179 = vmatprep.subr.mxu0 0.0
    %180 = vmatpush1.msra.mxu0 0.0
    %181 = vmatprep.subr.mxu0 0.0
    %182 = vmatpush1.msra.mxu0 0.0
    %183 = vmatprep.subr.mxu0 0.0
    %184 = vmatpush1.msra.mxu0 0.0
    %185 = vmatprep.subr.mxu0 0.0
    %186 = vmatpush1.msra.mxu0 0.0
    %187 = vmatprep.subr.mxu0 0.0
    %188 = vmatpush1.msra.mxu0 0.0
    %189 = vmatprep.subr.mxu0 0.0
    %190 = vmatpush1.msra.mxu0 0.0
    %191 = vmatprep.subr.mxu0 0.0
    %192 = vmatpush1.msra.mxu0 0.0
    %193 = vmatprep.subr.mxu0 0.0
    %194 = vmatpush1.msra.mxu0 0.0
    %195 = vmatprep.subr.mxu0 0.0
    %196 = vmatpush1.msra.mxu0 0.0
    %197 = vmatprep.mubr.f32.mxu0 0.0
    %198 = vmatmul.mubr.f32.gmra.mrb[0].mxu0 %v61
    %v199 = vpop.f32.mrb[0].mxu0
    %v200 = vadd.f32 0.0, %v199
    %v201 = vpop.f32.mrb[0].mxu0
    %202 = vdwg.mxu0
    %203 = vmatprep.subr.mxu0 0.0
    %204 = vmatpush1.msra.mxu0 %v51
    %205 = vmatprep.subr.mxu0 0.0
    %206 = vmatpush1.msra.mxu0 %v52
    %207 = vmatprep.subr.mxu0 0.0
    %208 = vmatpush1.msra.mxu0 %v53
    %209 = vmatprep.subr.mxu0 0.0
    %210 = vmatpush1.msra.mxu0 %v54
    %211 = vmatprep.subr.mxu0 0.0
    %212 = vmatpush1.msra.mxu0 0.0
    %213 = vmatprep.subr.mxu0 0.0
    %214 = vmatpush1.msra.mxu0 0.0
    %215 = vmatprep.subr.mxu0 0.0
    %216 = vmatpush1.msra.mxu0 0.0
    %217 = vmatprep.subr.mxu0 0.0
    %218 = vmatpush1.msra.mxu0 0.0
    %219 = vmatprep.subr.mxu0 0.0
    %220 = vmatpush1.msra.mxu0 0.0
    %221 = vmatprep.subr.mxu0 0.0
    %222 = vmatpush1.msra.mxu0 0.0
    %223 = vmatprep.subr.mxu0 0.0
    %224 = vmatpush1.msra.mxu0 0.0
    %225 = vmatprep.subr.mxu0 0.0
    %226 = vmatpush1.msra.mxu0 0.0
    %227 = vmatprep.subr.mxu0 0.0
    %228 = vmatpush1.msra.mxu0 0.0
    %229 = vmatprep.subr.mxu0 0.0
    %230 = vmatpush1.msra.mxu0 0.0
    %231 = vmatprep.subr.mxu0 0.0
    %232 = vmatpush1.msra.mxu0 0.0
    %233 = vmatprep.subr.mxu0 0.0
    %234 = vmatpush1.msra.mxu0 0.0
    %235 = vmatprep.subr.mxu0 0.0
    %236 = vmatpush1.msra.mxu0 0.0
    %237 = vmatprep.subr.mxu0 0.0
    %238 = vmatpush1.msra.mxu0 0.0
    %239 = vmatprep.subr.mxu0 0.0
    %240 = vmatpush1.msra.mxu0 0.0
    %241 = vmatprep.subr.mxu0 0.0
    %242 = vmatpush1.msra.mxu0 0.0
    %243 = vmatprep.subr.mxu0 0.0
    %244 = vmatpush1.msra.mxu0 0.0
    %245 = vmatprep.subr.mxu0 0.0
    %246 = vmatpush1.msra.mxu0 0.0
    %247 = vmatprep.subr.mxu0 0.0
    %248 = vmatpush1.msra.mxu0 0.0
    %249 = vmatprep.subr.mxu0 0.0
    %250 = vmatpush1.msra.mxu0 0.0
    %251 = vmatprep.subr.mxu0 0.0
    %252 = vmatpush1.msra.mxu0 0.0
    %253 = vmatprep.subr.mxu0 0.0
    %254 = vmatpush1.msra.mxu0 0.0
    %255 = vmatprep.subr.mxu0 0.0
    %256 = vmatpush1.msra.mxu0 0.0
    %257 = vmatprep.subr.mxu0 0.0
    %258 = vmatpush1.msra.mxu0 0.0
    %259 = vmatprep.subr.mxu0 0.0
    %260 = vmatpush1.msra.mxu0 0.0
    %261 = vmatprep.subr.mxu0 0.0
    %262 = vmatpush1.msra.mxu0 0.0
    %263 = vmatprep.subr.mxu0 0.0
    %264 = vmatpush1.msra.mxu0 0.0
    %265 = vmatprep.subr.mxu0 0.0
    %266 = vmatpush1.msra.mxu0 0.0
    %267 = vmatprep.mubr.f32.mxu0 0.0
    %268 = vmatmul.mubr.f32.gmra.mrb[0].mxu0 %v61
    %v269 = vpop.f32.mrb[0].mxu0
    %v270 = vadd.f32 0.0, %v269
    %v271 = vpop.f32.mrb[0].mxu0
    %272 = vdwg.mxu0
    %273 = vmatprep.subr.mxu0 0.0
    %274 = vmatpush1.msra.mxu0 %v55
    %275 = vmatprep.subr.mxu0 0.0
    %276 = vmatpush1.msra.mxu0 %v56
    %277 = vmatprep.subr.mxu0 0.0
    %278 = vmatpush1.msra.mxu0 %v57
    %279 = vmatprep.subr.mxu0 0.0
    %280 = vmatpush1.msra.mxu0 %v58
    %281 = vmatprep.subr.mxu0 0.0
    %282 = vmatpush1.msra.mxu0 0.0
    %283 = vmatprep.subr.mxu0 0.0
    %284 = vmatpush1.msra.mxu0 0.0
    %285 = vmatprep.subr.mxu0 0.0
    %286 = vmatpush1.msra.mxu0 0.0
    %287 = vmatprep.subr.mxu0 0.0
    %288 = vmatpush1.msra.mxu0 0.0
    %289 = vmatprep.subr.mxu0 0.0
    %290 = vmatpush1.msra.mxu0 0.0
    %291 = vmatprep.subr.mxu0 0.0
    %292 = vmatpush1.msra.mxu0 0.0
    %293 = vmatprep.subr.mxu0 0.0
    %294 = vmatpush1.msra.mxu0 0.0
    %295 = vmatprep.subr.mxu0 0.0
    %296 = vmatpush1.msra.mxu0 0.0
    %297 = vmatprep.subr.mxu0 0.0
    %298 = vmatpush1.msra.mxu0 0.0
    %299 = vmatprep.subr.mxu0 0.0
    %300 = vmatpush1.msra.mxu0 0.0
    %301 = vmatprep.subr.mxu0 0.0
    %302 = vmatpush1.msra.mxu0 0.0
    %303 = vmatprep.subr.mxu0 0.0
    %304 = vmatpush1.msra.mxu0 0.0
    %305 = vmatprep.subr.mxu0 0.0
    %306 = vmatpush1.msra.mxu0 0.0
    %307 = vmatprep.subr.mxu0 0.0
    %308 = vmatpush1.msra.mxu0 0.0
    %309 = vmatprep.subr.mxu0 0.0
    %310 = vmatpush1.msra.mxu0 0.0
    %311 = vmatprep.subr.mxu0 0.0
    %312 = vmatpush1.msra.mxu0 0.0
    %313 = vmatprep.subr.mxu0 0.0
    %314 = vmatpush1.msra.mxu0 0.0
    %315 = vmatprep.subr.mxu0 0.0
    %316 = vmatpush1.msra.mxu0 0.0
    %317 = vmatprep.subr.mxu0 0.0
    %318 = vmatpush1.msra.mxu0 0.0
    %319 = vmatprep.subr.mxu0 0.0
    %320 = vmatpush1.msra.mxu0 0.0
    %321 = vmatprep.subr.mxu0 0.0
    %322 = vmatpush1.msra.mxu0 0.0
    %323 = vmatprep.subr.mxu0 0.0
    %324 = vmatpush1.msra.mxu0 0.0
    %325 = vmatprep.subr.mxu0 0.0
    %326 = vmatpush1.msra.mxu0 0.0
    %327 = vmatprep.subr.mxu0 0.0
    %328 = vmatpush1.msra.mxu0 0.0
    %329 = vmatprep.subr.mxu0 0.0
    %330 = vmatpush1.msra.mxu0 0.0
    %331 = vmatprep.subr.mxu0 0.0
    %332 = vmatpush1.msra.mxu0 0.0
    %333 = vmatprep.subr.mxu0 0.0
    %334 = vmatpush1.msra.mxu0 0.0
    %335 = vmatprep.subr.mxu0 0.0
    %336 = vmatpush1.msra.mxu0 0.0
    %337 = vmatprep.mubr.f32.mxu0 0.0
    %338 = vmatmul.mubr.f32.gmra.mrb[0].mxu0 %v61
    %v339 = vpop.f32.mrb[0].mxu0
    %v340 = vadd.f32 0.0, %v339
    %v341 = vpop.f32.mrb[0].mxu0
    %342 = vdwg.mxu0
    %v344 = vsel %vm59, %v40, 0
    %346 = vmatprep.subr.mxu0 0.0
    %347 = vmatpush1.msra.mxu0 %v43
    %348 = vmatprep.subr.mxu0 0.0
    %349 = vmatpush1.msra.mxu0 %v44
    %350 = vmatprep.subr.mxu0 0.0
    %351 = vmatpush1.msra.mxu0 %v45
    %352 = vmatprep.subr.mxu0 0.0
    %353 = vmatpush1.msra.mxu0 %v46
    %354 = vmatprep.subr.mxu0 0.0
    %355 = vmatpush1.msra.mxu0 0.0
    %356 = vmatprep.subr.mxu0 0.0
    %357 = vmatpush1.msra.mxu0 0.0
    %358 = vmatprep.subr.mxu0 0.0
    %359 = vmatpush1.msra.mxu0 0.0
    %360 = vmatprep.subr.mxu0 0.0
    %361 = vmatpush1.msra.mxu0 0.0
    %362 = vmatprep.subr.mxu0 0.0
    %363 = vmatpush1.msra.mxu0 0.0
    %364 = vmatprep.subr.mxu0 0.0
    %365 = vmatpush1.msra.mxu0 0.0
    %366 = vmatprep.subr.mxu0 0.0
    %367 = vmatpush1.msra.mxu0 0.0
    %368 = vmatprep.subr.mxu0 0.0
    %369 = vmatpush1.msra.mxu0 0.0
    %370 = vmatprep.subr.mxu0 0.0
    %371 = vmatpush1.msra.mxu0 0.0
    %372 = vmatprep.subr.mxu0 0.0
    %373 = vmatpush1.msra.mxu0 0.0
    %374 = vmatprep.subr.mxu0 0.0
    %375 = vmatpush1.msra.mxu0 0.0
    %376 = vmatprep.subr.mxu0 0.0
    %377 = vmatpush1.msra.mxu0 0.0
    %378 = vmatprep.subr.mxu0 0.0
    %379 = vmatpush1.msra.mxu0 0.0
    %380 = vmatprep.subr.mxu0 0.0
    %381 = vmatpush1.msra.mxu0 0.0
    %382 = vmatprep.subr.mxu0 0.0
    %383 = vmatpush1.msra.mxu0 0.0
    %384 = vmatprep.subr.mxu0 0.0
    %385 = vmatpush1.msra.mxu0 0.0
    %386 = vmatprep.subr.mxu0 0.0
    %387 = vmatpush1.msra.mxu0 0.0
    %388 = vmatprep.subr.mxu0 0.0
    %389 = vmatpush1.msra.mxu0 0.0
    %390 = vmatprep.subr.mxu0 0.0
    %391 = vmatpush1.msra.mxu0 0.0
    %392 = vmatprep.subr.mxu0 0.0
    %393 = vmatpush1.msra.mxu0 0.0
    %394 = vmatprep.subr.mxu0 0.0
    %395 = vmatpush1.msra.mxu0 0.0
    %396 = vmatprep.subr.mxu0 0.0
    %397 = vmatpush1.msra.mxu0 0.0
    %398 = vmatprep.subr.mxu0 0.0
    %399 = vmatpush1.msra.mxu0 0.0
    %400 = vmatprep.subr.mxu0 0.0
    %401 = vmatpush1.msra.mxu0 0.0
    %402 = vmatprep.subr.mxu0 0.0
    %403 = vmatpush1.msra.mxu0 0.0
    %404 = vmatprep.subr.mxu0 0.0
    %405 = vmatpush1.msra.mxu0 0.0
    %406 = vmatprep.subr.mxu0 0.0
    %407 = vmatpush1.msra.mxu0 0.0
    %408 = vmatprep.subr.mxu0 0.0
    %409 = vmatpush1.msra.mxu0 0.0
    %410 = vmatprep.mubr.f32.mxu0 0.0
    %411 = vmatmul.mubr.f32.gmra.mrb[0].mxu0 %v344
    %v412 = vpop.f32.mrb[0].mxu0
    %v413 = vadd.f32 0.0, %v412
    %v414 = vpop.f32.mrb[0].mxu0
    %415 = vdwg.mxu0
    %416 = vmatprep.subr.mxu0 0.0
    %417 = vmatpush1.msra.mxu0 %v47
    %418 = vmatprep.subr.mxu0 0.0
    %419 = vmatpush1.msra.mxu0 %v48
    %420 = vmatprep.subr.mxu0 0.0
    %421 = vmatpush1.msra.mxu0 %v49
    %422 = vmatprep.subr.mxu0 0.0
    %423 = vmatpush1.msra.mxu0 %v50
    %424 = vmatprep.subr.mxu0 0.0
    %425 = vmatpush1.msra.mxu0 0.0
    %426 = vmatprep.subr.mxu0 0.0
    %427 = vmatpush1.msra.mxu0 0.0
    %428 = vmatprep.subr.mxu0 0.0
    %429 = vmatpush1.msra.mxu0 0.0
    %430 = vmatprep.subr.mxu0 0.0
    %431 = vmatpush1.msra.mxu0 0.0
    %432 = vmatprep.subr.mxu0 0.0
    %433 = vmatpush1.msra.mxu0 0.0
    %434 = vmatprep.subr.mxu0 0.0
    %435 = vmatpush1.msra.mxu0 0.0
    %436 = vmatprep.subr.mxu0 0.0
    %437 = vmatpush1.msra.mxu0 0.0
    %438 = vmatprep.subr.mxu0 0.0
    %439 = vmatpush1.msra.mxu0 0.0
    %440 = vmatprep.subr.mxu0 0.0
    %441 = vmatpush1.msra.mxu0 0.0
    %442 = vmatprep.subr.mxu0 0.0
    %443 = vmatpush1.msra.mxu0 0.0
    %444 = vmatprep.subr.mxu0 0.0
    %445 = vmatpush1.msra.mxu0 0.0
    %446 = vmatprep.subr.mxu0 0.0
    %447 = vmatpush1.msra.mxu0 0.0
    %448 = vmatprep.subr.mxu0 0.0
    %449 = vmatpush1.msra.mxu0 0.0
    %450 = vmatprep.subr.mxu0 0.0
    %451 = vmatpush1.msra.mxu0 0.0
    %452 = vmatprep.subr.mxu0 0.0
    %453 = vmatpush1.msra.mxu0 0.0
    %454 = vmatprep.subr.mxu0 0.0
    %455 = vmatpush1.msra.mxu0 0.0
    %456 = vmatprep.subr.mxu0 0.0
    %457 = vmatpush1.msra.mxu0 0.0
    %458 = vmatprep.subr.mxu0 0.0
    %459 = vmatpush1.msra.mxu0 0.0
    %460 = vmatprep.subr.mxu0 0.0
    %461 = vmatpush1.msra.mxu0 0.0
    %462 = vmatprep.subr.mxu0 0.0
    %463 = vmatpush1.msra.mxu0 0.0
    %464 = vmatprep.subr.mxu0 0.0
    %465 = vmatpush1.msra.mxu0 0.0
    %466 = vmatprep.subr.mxu0 0.0
    %467 = vmatpush1.msra.mxu0 0.0
    %468 = vmatprep.subr.mxu0 0.0
    %469 = vmatpush1.msra.mxu0 0.0
    %470 = vmatprep.subr.mxu0 0.0
    %471 = vmatpush1.msra.mxu0 0.0
    %472 = vmatprep.subr.mxu0 0.0
    %473 = vmatpush1.msra.mxu0 0.0
    %474 = vmatprep.subr.mxu0 0.0
    %475 = vmatpush1.msra.mxu0 0.0
    %476 = vmatprep.subr.mxu0 0.0
    %477 = vmatpush1.msra.mxu0 0.0
    %478 = vmatprep.subr.mxu0 0.0
    %479 = vmatpush1.msra.mxu0 0.0
    %480 = vmatprep.mubr.f32.mxu0 0.0
    %481 = vmatmul.mubr.f32.gmra.mrb[0].mxu0 %v344
    %v482 = vpop.f32.mrb[0].mxu0
    %v483 = vadd.f32 0.0, %v482
    %v484 = vpop.f32.mrb[0].mxu0
    %485 = vdwg.mxu0
    %486 = vmatprep.subr.mxu0 0.0
    %487 = vmatpush1.msra.mxu0 %v51
    %488 = vmatprep.subr.mxu0 0.0
    %489 = vmatpush1.msra.mxu0 %v52
    %490 = vmatprep.subr.mxu0 0.0
    %491 = vmatpush1.msra.mxu0 %v53
    %492 = vmatprep.subr.mxu0 0.0
    %493 = vmatpush1.msra.mxu0 %v54
    %494 = vmatprep.subr.mxu0 0.0
    %495 = vmatpush1.msra.mxu0 0.0
    %496 = vmatprep.subr.mxu0 0.0
    %497 = vmatpush1.msra.mxu0 0.0
    %498 = vmatprep.subr.mxu0 0.0
    %499 = vmatpush1.msra.mxu0 0.0
    %500 = vmatprep.subr.mxu0 0.0
    %501 = vmatpush1.msra.mxu0 0.0
    %502 = vmatprep.subr.mxu0 0.0
    %503 = vmatpush1.msra.mxu0 0.0
    %504 = vmatprep.subr.mxu0 0.0
    %505 = vmatpush1.msra.mxu0 0.0
    %506 = vmatprep.subr.mxu0 0.0
    %507 = vmatpush1.msra.mxu0 0.0
    %508 = vmatprep.subr.mxu0 0.0
    %509 = vmatpush1.msra.mxu0 0.0
    %510 = vmatprep.subr.mxu0 0.0
    %511 = vmatpush1.msra.mxu0 0.0
    %512 = vmatprep.subr.mxu0 0.0
    %513 = vmatpush1.msra.mxu0 0.0
    %514 = vmatprep.subr.mxu0 0.0
    %515 = vmatpush1.msra.mxu0 0.0
    %516 = vmatprep.subr.mxu0 0.0
    %517 = vmatpush1.msra.mxu0 0.0
    %518 = vmatprep.subr.mxu0 0.0
    %519 = vmatpush1.msra.mxu0 0.0
    %520 = vmatprep.subr.mxu0 0.0
    %521 = vmatpush1.msra.mxu0 0.0
    %522 = vmatprep.subr.mxu0 0.0
    %523 = vmatpush1.msra.mxu0 0.0
    %524 = vmatprep.subr.mxu0 0.0
    %525 = vmatpush1.msra.mxu0 0.0
    %526 = vmatprep.subr.mxu0 0.0
    %527 = vmatpush1.msra.mxu0 0.0
    %528 = vmatprep.subr.mxu0 0.0
    %529 = vmatpush1.msra.mxu0 0.0
    %530 = vmatprep.subr.mxu0 0.0
    %531 = vmatpush1.msra.mxu0 0.0
    %532 = vmatprep.subr.mxu0 0.0
    %533 = vmatpush1.msra.mxu0 0.0
    %534 = vmatprep.subr.mxu0 0.0
    %535 = vmatpush1.msra.mxu0 0.0
    %536 = vmatprep.subr.mxu0 0.0
    %537 = vmatpush1.msra.mxu0 0.0
    %538 = vmatprep.subr.mxu0 0.0
    %539 = vmatpush1.msra.mxu0 0.0
    %540 = vmatprep.subr.mxu0 0.0
    %541 = vmatpush1.msra.mxu0 0.0
    %542 = vmatprep.subr.mxu0 0.0
    %543 = vmatpush1.msra.mxu0 0.0
    %544 = vmatprep.subr.mxu0 0.0
    %545 = vmatpush1.msra.mxu0 0.0
    %546 = vmatprep.subr.mxu0 0.0
    %547 = vmatpush1.msra.mxu0 0.0
    %548 = vmatprep.subr.mxu0 0.0
    %549 = vmatpush1.msra.mxu0 0.0
    %550 = vmatprep.mubr.f32.mxu0 0.0
    %551 = vmatmul.mubr.f32.gmra.mrb[0].mxu0 %v344
    %v552 = vpop.f32.mrb[0].mxu0
    %v553 = vadd.f32 0.0, %v552
    %v554 = vpop.f32.mrb[0].mxu0
    %555 = vdwg.mxu0
    %556 = vmatprep.subr.mxu0 0.0
    %557 = vmatpush1.msra.mxu0 %v55
    %558 = vmatprep.subr.mxu0 0.0
    %559 = vmatpush1.msra.mxu0 %v56
    %560 = vmatprep.subr.mxu0 0.0
    %561 = vmatpush1.msra.mxu0 %v57
    %562 = vmatprep.subr.mxu0 0.0
    %563 = vmatpush1.msra.mxu0 %v58
    %564 = vmatprep.subr.mxu0 0.0
    %565 = vmatpush1.msra.mxu0 0.0
    %566 = vmatprep.subr.mxu0 0.0
    %567 = vmatpush1.msra.mxu0 0.0
    %568 = vmatprep.subr.mxu0 0.0
    %569 = vmatpush1.msra.mxu0 0.0
    %570 = vmatprep.subr.mxu0 0.0
    %571 = vmatpush1.msra.mxu0 0.0
    %572 = vmatprep.subr.mxu0 0.0
    %573 = vmatpush1.msra.mxu0 0.0
    %574 = vmatprep.subr.mxu0 0.0
    %575 = vmatpush1.msra.mxu0 0.0
    %576 = vmatprep.subr.mxu0 0.0
    %577 = vmatpush1.msra.mxu0 0.0
    %578 = vmatprep.subr.mxu0 0.0
    %579 = vmatpush1.msra.mxu0 0.0
    %580 = vmatprep.subr.mxu0 0.0
    %581 = vmatpush1.msra.mxu0 0.0
    %582 = vmatprep.subr.mxu0 0.0
    %583 = vmatpush1.msra.mxu0 0.0
    %584 = vmatprep.subr.mxu0 0.0
    %585 = vmatpush1.msra.mxu0 0.0
    %586 = vmatprep.subr.mxu0 0.0
    %587 = vmatpush1.msra.mxu0 0.0
    %588 = vmatprep.subr.mxu0 0.0
    %589 = vmatpush1.msra.mxu0 0.0
    %590 = vmatprep.subr.mxu0 0.0
    %591 = vmatpush1.msra.mxu0 0.0
    %592 = vmatprep.subr.mxu0 0.0
    %593 = vmatpush1.msra.mxu0 0.0
    %594 = vmatprep.subr.mxu0 0.0
    %595 = vmatpush1.msra.mxu0 0.0
    %596 = vmatprep.subr.mxu0 0.0
    %597 = vmatpush1.msra.mxu0 0.0
    %598 = vmatprep.subr.mxu0 0.0
    %599 = vmatpush1.msra.mxu0 0.0
    %600 = vmatprep.subr.mxu0 0.0
    %601 = vmatpush1.msra.mxu0 0.0
    %602 = vmatprep.subr.mxu0 0.0
    %603 = vmatpush1.msra.mxu0 0.0
    %604 = vmatprep.subr.mxu0 0.0
    %605 = vmatpush1.msra.mxu0 0.0
    %606 = vmatprep.subr.mxu0 0.0
    %607 = vmatpush1.msra.mxu0 0.0
    %608 = vmatprep.subr.mxu0 0.0
    %609 = vmatpush1.msra.mxu0 0.0
    %610 = vmatprep.subr.mxu0 0.0
    %611 = vmatpush1.msra.mxu0 0.0
    %612 = vmatprep.subr.mxu0 0.0
    %613 = vmatpush1.msra.mxu0 0.0
    %614 = vmatprep.subr.mxu0 0.0
    %615 = vmatpush1.msra.mxu0 0.0
    %616 = vmatprep.subr.mxu0 0.0
    %617 = vmatpush1.msra.mxu0 0.0
    %618 = vmatprep.subr.mxu0 0.0
    %619 = vmatpush1.msra.mxu0 0.0
    %620 = vmatprep.mubr.f32.mxu0 0.0
    %621 = vmatmul.mubr.f32.gmra.mrb[0].mxu0 %v344
    %v622 = vpop.f32.mrb[0].mxu0
    %v623 = vadd.f32 0.0, %v622
    %v624 = vpop.f32.mrb[0].mxu0
    %625 = vdwg.mxu0
    %627 = vrot.lane.b32.xlu0 %v130, 120
    %v628 = vpop.permute.xlu0 %627
    %vm629 = vcmask 64512
    %v630 = vsel %vm629, %v130, 0
    %v632 = vsel %vm629, %v628, 0
    %634 = vmatprep.subr.mxu0 0.0
    %635 = vmatpush1.xpose.msra.mxu0 %v632
    %636 = vmatprep.subr.mxu0 0.0
    %637 = vmatpush1.xpose.msra.mxu0 0.0
    %638 = vmatprep.subr.mxu0 0.0
    %639 = vmatpush1.xpose.msra.mxu0 0.0
    %640 = vmatprep.subr.mxu0 0.0
    %641 = vmatpush1.xpose.msra.mxu0 0.0
    %642 = vmatprep.subr.mxu0 0.0
    %643 = vmatpush1.xpose.msra.mxu0 0.0
    %644 = vmatprep.subr.mxu0 0.0
    %645 = vmatpush1.xpose.msra.mxu0 0.0
    %646 = vmatprep.subr.mxu0 0.0
    %647 = vmatpush1.xpose.msra.mxu0 0.0
    %648 = vmatprep.subr.mxu0 0.0
    %649 = vmatpush1.xpose.msra.mxu0 0.0
    %650 = vmatprep.subr.mxu0 0.0
    %651 = vmatpush1.xpose.msra.mxu0 0.0
    %652 = vmatprep.subr.mxu0 0.0
    %653 = vmatpush1.xpose.msra.mxu0 0.0
    %654 = vmatprep.subr.mxu0 0.0
    %655 = vmatpush1.xpose.msra.mxu0 0.0
    %656 = vmatprep.subr.mxu0 0.0
    %657 = vmatpush1.xpose.msra.mxu0 0.0
    %658 = vmatprep.subr.mxu0 0.0
    %659 = vmatpush1.xpose.msra.mxu0 0.0
    %660 = vmatprep.subr.mxu0 0.0
    %661 = vmatpush1.xpose.msra.mxu0 0.0
    %662 = vmatprep.subr.mxu0 0.0
    %663 = vmatpush1.xpose.msra.mxu0 0.0
    %664 = vmatprep.subr.mxu0 0.0
    %665 = vmatpush1.xpose.msra.mxu0 0.0
    %666 = vmatprep.subr.mxu0 0.0
    %667 = vmatpush1.xpose.msra.mxu0 0.0
    %668 = vmatprep.subr.mxu0 0.0
    %669 = vmatpush1.xpose.msra.mxu0 0.0
    %670 = vmatprep.subr.mxu0 0.0
    %671 = vmatpush1.xpose.msra.mxu0 0.0
    %672 = vmatprep.subr.mxu0 0.0
    %673 = vmatpush1.xpose.msra.mxu0 0.0
    %674 = vmatprep.subr.mxu0 0.0
    %675 = vmatpush1.xpose.msra.mxu0 0.0
    %676 = vmatprep.subr.mxu0 0.0
    %677 = vmatpush1.xpose.msra.mxu0 0.0
    %678 = vmatprep.subr.mxu0 0.0
    %679 = vmatpush1.xpose.msra.mxu0 0.0
    %680 = vmatprep.subr.mxu0 0.0
    %681 = vmatpush1.xpose.msra.mxu0 0.0
    %682 = vmatprep.subr.mxu0 0.0
    %683 = vmatpush1.xpose.msra.mxu0 0.0
    %684 = vmatprep.subr.mxu0 0.0
    %685 = vmatpush1.xpose.msra.mxu0 0.0
    %686 = vmatprep.subr.mxu0 0.0
    %687 = vmatpush1.xpose.msra.mxu0 0.0
    %688 = vmatprep.subr.mxu0 0.0
    %689 = vmatpush1.xpose.msra.mxu0 0.0
    %690 = vmatprep.subr.mxu0 0.0
    %691 = vmatpush1.xpose.msra.mxu0 0.0
    %692 = vmatprep.subr.mxu0 0.0
    %693 = vmatpush1.xpose.msra.mxu0 0.0
    %694 = vmatprep.subr.mxu0 0.0
    %695 = vmatpush1.xpose.msra.mxu0 0.0
    %696 = vmatprep.subr.mxu0 0.0
    %697 = vmatpush1.xpose.msra.mxu0 0.0
    %698 = vmatprep.mubr.f32.mxu0 0.0
    %699 = vmatmul.mubr.f32.gmra.mrb[0].mxu0 %v630
    %v700 = vpop.f32.mrb[0].mxu0
    %v701 = vadd.f32 0.0, %v700
    %v702 = vpop.f32.mrb[0].mxu0
    %703 = vdwg.mxu0
    %705 = vrot.lane.b32.xlu0 %v200, 120
    %v706 = vpop.permute.xlu0 %705
    %v707 = vsel %vm629, %v200, 0
    %v709 = vsel %vm629, %v706, 0
    %711 = vmatprep.subr.mxu0 0.0
    %712 = vmatpush1.xpose.msra.mxu0 %v709
    %713 = vmatprep.subr.mxu0 0.0
    %714 = vmatpush1.xpose.msra.mxu0 0.0
    %715 = vmatprep.subr.mxu0 0.0
    %716 = vmatpush1.xpose.msra.mxu0 0.0
    %717 = vmatprep.subr.mxu0 0.0
    %718 = vmatpush1.xpose.msra.mxu0 0.0
    %719 = vmatprep.subr.mxu0 0.0
    %720 = vmatpush1.xpose.msra.mxu0 0.0
    %721 = vmatprep.subr.mxu0 0.0
    %722 = vmatpush1.xpose.msra.mxu0 0.0
    %723 = vmatprep.subr.mxu0 0.0
    %724 = vmatpush1.xpose.msra.mxu0 0.0
    %725 = vmatprep.subr.mxu0 0.0
    %726 = vmatpush1.xpose.msra.mxu0 0.0
    %727 = vmatprep.subr.mxu0 0.0
    %728 = vmatpush1.xpose.msra.mxu0 0.0
    %729 = vmatprep.subr.mxu0 0.0
    %730 = vmatpush1.xpose.msra.mxu0 0.0
    %731 = vmatprep.subr.mxu0 0.0
    %732 = vmatpush1.xpose.msra.mxu0 0.0
    %733 = vmatprep.subr.mxu0 0.0
    %734 = vmatpush1.xpose.msra.mxu0 0.0
    %735 = vmatprep.subr.mxu0 0.0
    %736 = vmatpush1.xpose.msra.mxu0 0.0
    %737 = vmatprep.subr.mxu0 0.0
    %738 = vmatpush1.xpose.msra.mxu0 0.0
    %739 = vmatprep.subr.mxu0 0.0
    %740 = vmatpush1.xpose.msra.mxu0 0.0
    %741 = vmatprep.subr.mxu0 0.0
    %742 = vmatpush1.xpose.msra.mxu0 0.0
    %743 = vmatprep.subr.mxu0 0.0
    %744 = vmatpush1.xpose.msra.mxu0 0.0
    %745 = vmatprep.subr.mxu0 0.0
    %746 = vmatpush1.xpose.msra.mxu0 0.0
    %747 = vmatprep.subr.mxu0 0.0
    %748 = vmatpush1.xpose.msra.mxu0 0.0
    %749 = vmatprep.subr.mxu0 0.0
    %750 = vmatpush1.xpose.msra.mxu0 0.0
    %751 = vmatprep.subr.mxu0 0.0
    %752 = vmatpush1.xpose.msra.mxu0 0.0
    %753 = vmatprep.subr.mxu0 0.0
    %754 = vmatpush1.xpose.msra.mxu0 0.0
    %755 = vmatprep.subr.mxu0 0.0
    %756 = vmatpush1.xpose.msra.mxu0 0.0
    %757 = vmatprep.subr.mxu0 0.0
    %758 = vmatpush1.xpose.msra.mxu0 0.0
    %759 = vmatprep.subr.mxu0 0.0
    %760 = vmatpush1.xpose.msra.mxu0 0.0
    %761 = vmatprep.subr.mxu0 0.0
    %762 = vmatpush1.xpose.msra.mxu0 0.0
    %763 = vmatprep.subr.mxu0 0.0
    %764 = vmatpush1.xpose.msra.mxu0 0.0
    %765 = vmatprep.subr.mxu0 0.0
    %766 = vmatpush1.xpose.msra.mxu0 0.0
    %767 = vmatprep.subr.mxu0 0.0
    %768 = vmatpush1.xpose.msra.mxu0 0.0
    %769 = vmatprep.subr.mxu0 0.0
    %770 = vmatpush1.xpose.msra.mxu0 0.0
    %771 = vmatprep.subr.mxu0 0.0
    %772 = vmatpush1.xpose.msra.mxu0 0.0
    %773 = vmatprep.subr.mxu0 0.0
    %774 = vmatpush1.xpose.msra.mxu0 0.0
    %775 = vmatprep.mubr.f32.mxu0 0.0
    %776 = vmatmul.mubr.f32.gmra.mrb[0].mxu0 %v707
    %v777 = vpop.f32.mrb[0].mxu0
    %v778 = vadd.f32 0.0, %v777
    %v779 = vpop.f32.mrb[0].mxu0
    %780 = vdwg.mxu0
    %782 = vrot.lane.b32.xlu0 %v270, 120
    %v783 = vpop.permute.xlu0 %782
    %v784 = vsel %vm629, %v270, 0
    %v786 = vsel %vm629, %v783, 0
    %788 = vmatprep.subr.mxu0 0.0
    %789 = vmatpush1.xpose.msra.mxu0 %v786
    %790 = vmatprep.subr.mxu0 0.0
    %791 = vmatpush1.xpose.msra.mxu0 0.0
    %792 = vmatprep.subr.mxu0 0.0
    %793 = vmatpush1.xpose.msra.mxu0 0.0
    %794 = vmatprep.subr.mxu0 0.0
    %795 = vmatpush1.xpose.msra.mxu0 0.0
    %796 = vmatprep.subr.mxu0 0.0
    %797 = vmatpush1.xpose.msra.mxu0 0.0
    %798 = vmatprep.subr.mxu0 0.0
    %799 = vmatpush1.xpose.msra.mxu0 0.0
    %800 = vmatprep.subr.mxu0 0.0
    %801 = vmatpush1.xpose.msra.mxu0 0.0
    %802 = vmatprep.subr.mxu0 0.0
    %803 = vmatpush1.xpose.msra.mxu0 0.0
    %804 = vmatprep.subr.mxu0 0.0
    %805 = vmatpush1.xpose.msra.mxu0 0.0
    %806 = vmatprep.subr.mxu0 0.0
    %807 = vmatpush1.xpose.msra.mxu0 0.0
    %808 = vmatprep.subr.mxu0 0.0
    %809 = vmatpush1.xpose.msra.mxu0 0.0
    %810 = vmatprep.subr.mxu0 0.0
    %811 = vmatpush1.xpose.msra.mxu0 0.0
    %812 = vmatprep.subr.mxu0 0.0
    %813 = vmatpush1.xpose.msra.mxu0 0.0
    %814 = vmatprep.subr.mxu0 0.0
    %815 = vmatpush1.xpose.msra.mxu0 0.0
    %816 = vmatprep.subr.mxu0 0.0
    %817 = vmatpush1.xpose.msra.mxu0 0.0
    %818 = vmatprep.subr.mxu0 0.0
    %819 = vmatpush1.xpose.msra.mxu0 0.0
    %820 = vmatprep.subr.mxu0 0.0
    %821 = vmatpush1.xpose.msra.mxu0 0.0
    %822 = vmatprep.subr.mxu0 0.0
    %823 = vmatpush1.xpose.msra.mxu0 0.0
    %824 = vmatprep.subr.mxu0 0.0
    %825 = vmatpush1.xpose.msra.mxu0 0.0
    %826 = vmatprep.subr.mxu0 0.0
    %827 = vmatpush1.xpose.msra.mxu0 0.0
    %828 = vmatprep.subr.mxu0 0.0
    %829 = vmatpush1.xpose.msra.mxu0 0.0
    %830 = vmatprep.subr.mxu0 0.0
    %831 = vmatpush1.xpose.msra.mxu0 0.0
    %832 = vmatprep.subr.mxu0 0.0
    %833 = vmatpush1.xpose.msra.mxu0 0.0
    %834 = vmatprep.subr.mxu0 0.0
    %835 = vmatpush1.xpose.msra.mxu0 0.0
    %836 = vmatprep.subr.mxu0 0.0
    %837 = vmatpush1.xpose.msra.mxu0 0.0
    %838 = vmatprep.subr.mxu0 0.0
    %839 = vmatpush1.xpose.msra.mxu0 0.0
    %840 = vmatprep.subr.mxu0 0.0
    %841 = vmatpush1.xpose.msra.mxu0 0.0
    %842 = vmatprep.subr.mxu0 0.0
    %843 = vmatpush1.xpose.msra.mxu0 0.0
    %844 = vmatprep.subr.mxu0 0.0
    %845 = vmatpush1.xpose.msra.mxu0 0.0
    %846 = vmatprep.subr.mxu0 0.0
    %847 = vmatpush1.xpose.msra.mxu0 0.0
    %848 = vmatprep.subr.mxu0 0.0
    %849 = vmatpush1.xpose.msra.mxu0 0.0
    %850 = vmatprep.subr.mxu0 0.0
    %851 = vmatpush1.xpose.msra.mxu0 0.0
    %852 = vmatprep.mubr.f32.mxu0 0.0
    %853 = vmatmul.mubr.f32.gmra.mrb[0].mxu0 %v784
    %v854 = vpop.f32.mrb[0].mxu0
    %v855 = vadd.f32 0.0, %v854
    %v856 = vpop.f32.mrb[0].mxu0
    %857 = vdwg.mxu0
    %859 = vrot.lane.b32.xlu0 %v340, 120
    %v860 = vpop.permute.xlu0 %859
    %v861 = vsel %vm629, %v340, 0
    %v863 = vsel %vm629, %v860, 0
    %865 = vmatprep.subr.mxu0 0.0
    %866 = vmatpush1.xpose.msra.mxu0 %v863
    %867 = vmatprep.subr.mxu0 0.0
    %868 = vmatpush1.xpose.msra.mxu0 0.0
    %869 = vmatprep.subr.mxu0 0.0
    %870 = vmatpush1.xpose.msra.mxu0 0.0
    %871 = vmatprep.subr.mxu0 0.0
    %872 = vmatpush1.xpose.msra.mxu0 0.0
    %873 = vmatprep.subr.mxu0 0.0
    %874 = vmatpush1.xpose.msra.mxu0 0.0
    %875 = vmatprep.subr.mxu0 0.0
    %876 = vmatpush1.xpose.msra.mxu0 0.0
    %877 = vmatprep.subr.mxu0 0.0
    %878 = vmatpush1.xpose.msra.mxu0 0.0
    %879 = vmatprep.subr.mxu0 0.0
    %880 = vmatpush1.xpose.msra.mxu0 0.0
    %881 = vmatprep.subr.mxu0 0.0
    %882 = vmatpush1.xpose.msra.mxu0 0.0
    %883 = vmatprep.subr.mxu0 0.0
    %884 = vmatpush1.xpose.msra.mxu0 0.0
    %885 = vmatprep.subr.mxu0 0.0
    %886 = vmatpush1.xpose.msra.mxu0 0.0
    %887 = vmatprep.subr.mxu0 0.0
    %888 = vmatpush1.xpose.msra.mxu0 0.0
    %889 = vmatprep.subr.mxu0 0.0
    %890 = vmatpush1.xpose.msra.mxu0 0.0
    %891 = vmatprep.subr.mxu0 0.0
    %892 = vmatpush1.xpose.msra.mxu0 0.0
    %893 = vmatprep.subr.mxu0 0.0
    %894 = vmatpush1.xpose.msra.mxu0 0.0
    %895 = vmatprep.subr.mxu0 0.0
    %896 = vmatpush1.xpose.msra.mxu0 0.0
    %897 = vmatprep.subr.mxu0 0.0
    %898 = vmatpush1.xpose.msra.mxu0 0.0
    %899 = vmatprep.subr.mxu0 0.0
    %900 = vmatpush1.xpose.msra.mxu0 0.0
    %901 = vmatprep.subr.mxu0 0.0
    %902 = vmatpush1.xpose.msra.mxu0 0.0
    %903 = vmatprep.subr.mxu0 0.0
    %904 = vmatpush1.xpose.msra.mxu0 0.0
    %905 = vmatprep.subr.mxu0 0.0
    %906 = vmatpush1.xpose.msra.mxu0 0.0
    %907 = vmatprep.subr.mxu0 0.0
    %908 = vmatpush1.xpose.msra.mxu0 0.0
    %909 = vmatprep.subr.mxu0 0.0
    %910 = vmatpush1.xpose.msra.mxu0 0.0
    %911 = vmatprep.subr.mxu0 0.0
    %912 = vmatpush1.xpose.msra.mxu0 0.0
    %913 = vmatprep.subr.mxu0 0.0
    %914 = vmatpush1.xpose.msra.mxu0 0.0
    %915 = vmatprep.subr.mxu0 0.0
    %916 = vmatpush1.xpose.msra.mxu0 0.0
    %917 = vmatprep.subr.mxu0 0.0
    %918 = vmatpush1.xpose.msra.mxu0 0.0
    %919 = vmatprep.subr.mxu0 0.0
    %920 = vmatpush1.xpose.msra.mxu0 0.0
    %921 = vmatprep.subr.mxu0 0.0
    %922 = vmatpush1.xpose.msra.mxu0 0.0
    %923 = vmatprep.subr.mxu0 0.0
    %924 = vmatpush1.xpose.msra.mxu0 0.0
    %925 = vmatprep.subr.mxu0 0.0
    %926 = vmatpush1.xpose.msra.mxu0 0.0
    %927 = vmatprep.subr.mxu0 0.0
    %928 = vmatpush1.xpose.msra.mxu0 0.0
    %929 = vmatprep.mubr.f32.mxu0 0.0
    %930 = vmatmul.mubr.f32.gmra.mrb[0].mxu0 %v861
    %v931 = vpop.f32.mrb[0].mxu0
    %v932 = vadd.f32 0.0, %v931
    %v933 = vpop.f32.mrb[0].mxu0
    %934 = vdwg.mxu0
    %936 = vrot.lane.b32.xlu0 %v413, 120
    %v937 = vpop.permute.xlu0 %936
    %v938 = vsel %vm629, %v413, 0
    %v940 = vsel %vm629, %v937, 0
    %942 = vmatprep.subr.mxu0 0.0
    %943 = vmatpush1.xpose.msra.mxu0 %v940
    %944 = vmatprep.subr.mxu0 0.0
    %945 = vmatpush1.xpose.msra.mxu0 0.0
    %946 = vmatprep.subr.mxu0 0.0
    %947 = vmatpush1.xpose.msra.mxu0 0.0
    %948 = vmatprep.subr.mxu0 0.0
    %949 = vmatpush1.xpose.msra.mxu0 0.0
    %950 = vmatprep.subr.mxu0 0.0
    %951 = vmatpush1.xpose.msra.mxu0 0.0
    %952 = vmatprep.subr.mxu0 0.0
    %953 = vmatpush1.xpose.msra.mxu0 0.0
    %954 = vmatprep.subr.mxu0 0.0
    %955 = vmatpush1.xpose.msra.mxu0 0.0
    %956 = vmatprep.subr.mxu0 0.0
    %957 = vmatpush1.xpose.msra.mxu0 0.0
    %958 = vmatprep.subr.mxu0 0.0
    %959 = vmatpush1.xpose.msra.mxu0 0.0
    %960 = vmatprep.subr.mxu0 0.0
    %961 = vmatpush1.xpose.msra.mxu0 0.0
    %962 = vmatprep.subr.mxu0 0.0
    %963 = vmatpush1.xpose.msra.mxu0 0.0
    %964 = vmatprep.subr.mxu0 0.0
    %965 = vmatpush1.xpose.msra.mxu0 0.0
    %966 = vmatprep.subr.mxu0 0.0
    %967 = vmatpush1.xpose.msra.mxu0 0.0
    %968 = vmatprep.subr.mxu0 0.0
    %969 = vmatpush1.xpose.msra.mxu0 0.0
    %970 = vmatprep.subr.mxu0 0.0
    %971 = vmatpush1.xpose.msra.mxu0 0.0
    %972 = vmatprep.subr.mxu0 0.0
    %973 = vmatpush1.xpose.msra.mxu0 0.0
    %974 = vmatprep.subr.mxu0 0.0
    %975 = vmatpush1.xpose.msra.mxu0 0.0
    %976 = vmatprep.subr.mxu0 0.0
    %977 = vmatpush1.xpose.msra.mxu0 0.0
    %978 = vmatprep.subr.mxu0 0.0
    %979 = vmatpush1.xpose.msra.mxu0 0.0
    %980 = vmatprep.subr.mxu0 0.0
    %981 = vmatpush1.xpose.msra.mxu0 0.0
    %982 = vmatprep.subr.mxu0 0.0
    %983 = vmatpush1.xpose.msra.mxu0 0.0
    %984 = vmatprep.subr.mxu0 0.0
    %985 = vmatpush1.xpose.msra.mxu0 0.0
    %986 = vmatprep.subr.mxu0 0.0
    %987 = vmatpush1.xpose.msra.mxu0 0.0
    %988 = vmatprep.subr.mxu0 0.0
    %989 = vmatpush1.xpose.msra.mxu0 0.0
    %990 = vmatprep.subr.mxu0 0.0
    %991 = vmatpush1.xpose.msra.mxu0 0.0
    %992 = vmatprep.subr.mxu0 0.0
    %993 = vmatpush1.xpose.msra.mxu0 0.0
    %994 = vmatprep.subr.mxu0 0.0
    %995 = vmatpush1.xpose.msra.mxu0 0.0
    %996 = vmatprep.subr.mxu0 0.0
    %997 = vmatpush1.xpose.msra.mxu0 0.0
    %998 = vmatprep.subr.mxu0 0.0
    %999 = vmatpush1.xpose.msra.mxu0 0.0
    %1000 = vmatprep.subr.mxu0 0.0
    %1001 = vmatpush1.xpose.msra.mxu0 0.0
    %1002 = vmatprep.subr.mxu0 0.0
    %1003 = vmatpush1.xpose.msra.mxu0 0.0
    %1004 = vmatprep.subr.mxu0 0.0
    %1005 = vmatpush1.xpose.msra.mxu0 0.0
    %1006 = vmatprep.mubr.f32.mxu0 0.0
    %1007 = vmatmul.mubr.f32.gmra.mrb[0].mxu0 %v938
    %v1008 = vpop.f32.mrb[0].mxu0
    %v1009 = vadd.f32 0.0, %v1008
    %v1010 = vpop.f32.mrb[0].mxu0
    %1011 = vdwg.mxu0
    %1013 = vrot.lane.b32.xlu0 %v483, 120
    %v1014 = vpop.permute.xlu0 %1013
    %v1015 = vsel %vm629, %v483, 0
    %v1017 = vsel %vm629, %v1014, 0
    %1019 = vmatprep.subr.mxu0 0.0
    %1020 = vmatpush1.xpose.msra.mxu0 %v1017
    %1021 = vmatprep.subr.mxu0 0.0
    %1022 = vmatpush1.xpose.msra.mxu0 0.0
    %1023 = vmatprep.subr.mxu0 0.0
    %1024 = vmatpush1.xpose.msra.mxu0 0.0
    %1025 = vmatprep.subr.mxu0 0.0
    %1026 = vmatpush1.xpose.msra.mxu0 0.0
    %1027 = vmatprep.subr.mxu0 0.0
    %1028 = vmatpush1.xpose.msra.mxu0 0.0
    %1029 = vmatprep.subr.mxu0 0.0
    %1030 = vmatpush1.xpose.msra.mxu0 0.0
    %1031 = vmatprep.subr.mxu0 0.0
    %1032 = vmatpush1.xpose.msra.mxu0 0.0
    %1033 = vmatprep.subr.mxu0 0.0
    %1034 = vmatpush1.xpose.msra.mxu0 0.0
    %1035 = vmatprep.subr.mxu0 0.0
    %1036 = vmatpush1.xpose.msra.mxu0 0.0
    %1037 = vmatprep.subr.mxu0 0.0
    %1038 = vmatpush1.xpose.msra.mxu0 0.0
    %1039 = vmatprep.subr.mxu0 0.0
    %1040 = vmatpush1.xpose.msra.mxu0 0.0
    %1041 = vmatprep.subr.mxu0 0.0
    %1042 = vmatpush1.xpose.msra.mxu0 0.0
    %1043 = vmatprep.subr.mxu0 0.0
    %1044 = vmatpush1.xpose.msra.mxu0 0.0
    %1045 = vmatprep.subr.mxu0 0.0
    %1046 = vmatpush1.xpose.msra.mxu0 0.0
    %1047 = vmatprep.subr.mxu0 0.0
    %1048 = vmatpush1.xpose.msra.mxu0 0.0
    %1049 = vmatprep.subr.mxu0 0.0
    %1050 = vmatpush1.xpose.msra.mxu0 0.0
    %1051 = vmatprep.subr.mxu0 0.0
    %1052 = vmatpush1.xpose.msra.mxu0 0.0
    %1053 = vmatprep.subr.mxu0 0.0
    %1054 = vmatpush1.xpose.msra.mxu0 0.0
    %1055 = vmatprep.subr.mxu0 0.0
    %1056 = vmatpush1.xpose.msra.mxu0 0.0
    %1057 = vmatprep.subr.mxu0 0.0
    %1058 = vmatpush1.xpose.msra.mxu0 0.0
    %1059 = vmatprep.subr.mxu0 0.0
    %1060 = vmatpush1.xpose.msra.mxu0 0.0
    %1061 = vmatprep.subr.mxu0 0.0
    %1062 = vmatpush1.xpose.msra.mxu0 0.0
    %1063 = vmatprep.subr.mxu0 0.0
    %1064 = vmatpush1.xpose.msra.mxu0 0.0
    %1065 = vmatprep.subr.mxu0 0.0
    %1066 = vmatpush1.xpose.msra.mxu0 0.0
    %1067 = vmatprep.subr.mxu0 0.0
    %1068 = vmatpush1.xpose.msra.mxu0 0.0
    %1069 = vmatprep.subr.mxu0 0.0
    %1070 = vmatpush1.xpose.msra.mxu0 0.0
    %1071 = vmatprep.subr.mxu0 0.0
    %1072 = vmatpush1.xpose.msra.mxu0 0.0
    %1073 = vmatprep.subr.mxu0 0.0
    %1074 = vmatpush1.xpose.msra.mxu0 0.0
    %1075 = vmatprep.subr.mxu0 0.0
    %1076 = vmatpush1.xpose.msra.mxu0 0.0
    %1077 = vmatprep.subr.mxu0 0.0
    %1078 = vmatpush1.xpose.msra.mxu0 0.0
    %1079 = vmatprep.subr.mxu0 0.0
    %1080 = vmatpush1.xpose.msra.mxu0 0.0
    %1081 = vmatprep.subr.mxu0 0.0
    %1082 = vmatpush1.xpose.msra.mxu0 0.0
    %1083 = vmatprep.mubr.f32.mxu0 0.0
    %1084 = vmatmul.mubr.f32.gmra.mrb[0].mxu0 %v1015
    %v1085 = vpop.f32.mrb[0].mxu0
    %v1086 = vadd.f32 0.0, %v1085
    %v1087 = vpop.f32.mrb[0].mxu0
    %1088 = vdwg.mxu0
    %1090 = vrot.lane.b32.xlu0 %v553, 120
    %v1091 = vpop.permute.xlu0 %1090
    %v1092 = vsel %vm629, %v553, 0
    %v1094 = vsel %vm629, %v1091, 0
    %1096 = vmatprep.subr.mxu0 0.0
    %1097 = vmatpush1.xpose.msra.mxu0 %v1094
    %1098 = vmatprep.subr.mxu0 0.0
    %1099 = vmatpush1.xpose.msra.mxu0 0.0
    %1100 = vmatprep.subr.mxu0 0.0
    %1101 = vmatpush1.xpose.msra.mxu0 0.0
    %1102 = vmatprep.subr.mxu0 0.0
    %1103 = vmatpush1.xpose.msra.mxu0 0.0
    %1104 = vmatprep.subr.mxu0 0.0
    %1105 = vmatpush1.xpose.msra.mxu0 0.0
    %1106 = vmatprep.subr.mxu0 0.0
    %1107 = vmatpush1.xpose.msra.mxu0 0.0
    %1108 = vmatprep.subr.mxu0 0.0
    %1109 = vmatpush1.xpose.msra.mxu0 0.0
    %1110 = vmatprep.subr.mxu0 0.0
    %1111 = vmatpush1.xpose.msra.mxu0 0.0
    %1112 = vmatprep.subr.mxu0 0.0
    %1113 = vmatpush1.xpose.msra.mxu0 0.0
    %1114 = vmatprep.subr.mxu0 0.0
    %1115 = vmatpush1.xpose.msra.mxu0 0.0
    %1116 = vmatprep.subr.mxu0 0.0
    %1117 = vmatpush1.xpose.msra.mxu0 0.0
    %1118 = vmatprep.subr.mxu0 0.0
    %1119 = vmatpush1.xpose.msra.mxu0 0.0
    %1120 = vmatprep.subr.mxu0 0.0
    %1121 = vmatpush1.xpose.msra.mxu0 0.0
    %1122 = vmatprep.subr.mxu0 0.0
    %1123 = vmatpush1.xpose.msra.mxu0 0.0
    %1124 = vmatprep.subr.mxu0 0.0
    %1125 = vmatpush1.xpose.msra.mxu0 0.0
    %1126 = vmatprep.subr.mxu0 0.0
    %1127 = vmatpush1.xpose.msra.mxu0 0.0
    %1128 = vmatprep.subr.mxu0 0.0
    %1129 = vmatpush1.xpose.msra.mxu0 0.0
    %1130 = vmatprep.subr.mxu0 0.0
    %1131 = vmatpush1.xpose.msra.mxu0 0.0
    %1132 = vmatprep.subr.mxu0 0.0
    %1133 = vmatpush1.xpose.msra.mxu0 0.0
    %1134 = vmatprep.subr.mxu0 0.0
    %1135 = vmatpush1.xpose.msra.mxu0 0.0
    %1136 = vmatprep.subr.mxu0 0.0
    %1137 = vmatpush1.xpose.msra.mxu0 0.0
    %1138 = vmatprep.subr.mxu0 0.0
    %1139 = vmatpush1.xpose.msra.mxu0 0.0
    %1140 = vmatprep.subr.mxu0 0.0
    %1141 = vmatpush1.xpose.msra.mxu0 0.0
    %1142 = vmatprep.subr.mxu0 0.0
    %1143 = vmatpush1.xpose.msra.mxu0 0.0
    %1144 = vmatprep.subr.mxu0 0.0
    %1145 = vmatpush1.xpose.msra.mxu0 0.0
    %1146 = vmatprep.subr.mxu0 0.0
    %1147 = vmatpush1.xpose.msra.mxu0 0.0
    %1148 = vmatprep.subr.mxu0 0.0
    %1149 = vmatpush1.xpose.msra.mxu0 0.0
    %1150 = vmatprep.subr.mxu0 0.0
    %1151 = vmatpush1.xpose.msra.mxu0 0.0
    %1152 = vmatprep.subr.mxu0 0.0
    %1153 = vmatpush1.xpose.msra.mxu0 0.0
    %1154 = vmatprep.subr.mxu0 0.0
    %1155 = vmatpush1.xpose.msra.mxu0 0.0
    %1156 = vmatprep.subr.mxu0 0.0
    %1157 = vmatpush1.xpose.msra.mxu0 0.0
    %1158 = vmatprep.subr.mxu0 0.0
    %1159 = vmatpush1.xpose.msra.mxu0 0.0
    %1160 = vmatprep.mubr.f32.mxu0 0.0
    %1161 = vmatmul.mubr.f32.gmra.mrb[0].mxu0 %v1092
    %v1162 = vpop.f32.mrb[0].mxu0
    %v1163 = vadd.f32 0.0, %v1162
    %v1164 = vpop.f32.mrb[0].mxu0
    %1165 = vdwg.mxu0
    %1167 = vrot.lane.b32.xlu0 %v623, 120
    %v1168 = vpop.permute.xlu0 %1167
    %v1169 = vsel %vm629, %v623, 0
    %v1171 = vsel %vm629, %v1168, 0
    %1173 = vmatprep.subr.mxu0 0.0
    %1174 = vmatpush1.xpose.msra.mxu0 %v1171
    %1175 = vmatprep.subr.mxu0 0.0
    %1176 = vmatpush1.xpose.msra.mxu0 0.0
    %1177 = vmatprep.subr.mxu0 0.0
    %1178 = vmatpush1.xpose.msra.mxu0 0.0
    %1179 = vmatprep.subr.mxu0 0.0
    %1180 = vmatpush1.xpose.msra.mxu0 0.0
    %1181 = vmatprep.subr.mxu0 0.0
    %1182 = vmatpush1.xpose.msra.mxu0 0.0
    %1183 = vmatprep.subr.mxu0 0.0
    %1184 = vmatpush1.xpose.msra.mxu0 0.0
    %1185 = vmatprep.subr.mxu0 0.0
    %1186 = vmatpush1.xpose.msra.mxu0 0.0
    %1187 = vmatprep.subr.mxu0 0.0
    %1188 = vmatpush1.xpose.msra.mxu0 0.0
    %1189 = vmatprep.subr.mxu0 0.0
    %1190 = vmatpush1.xpose.msra.mxu0 0.0
    %1191 = vmatprep.subr.mxu0 0.0
    %1192 = vmatpush1.xpose.msra.mxu0 0.0
    %1193 = vmatprep.subr.mxu0 0.0
    %1194 = vmatpush1.xpose.msra.mxu0 0.0
    %1195 = vmatprep.subr.mxu0 0.0
    %1196 = vmatpush1.xpose.msra.mxu0 0.0
    %1197 = vmatprep.subr.mxu0 0.0
    %1198 = vmatpush1.xpose.msra.mxu0 0.0
    %1199 = vmatprep.subr.mxu0 0.0
    %1200 = vmatpush1.xpose.msra.mxu0 0.0
    %1201 = vmatprep.subr.mxu0 0.0
    %1202 = vmatpush1.xpose.msra.mxu0 0.0
    %1203 = vmatprep.subr.mxu0 0.0
    %1204 = vmatpush1.xpose.msra.mxu0 0.0
    %1205 = vmatprep.subr.mxu0 0.0
    %1206 = vmatpush1.xpose.msra.mxu0 0.0
    %1207 = vmatprep.subr.mxu0 0.0
    %1208 = vmatpush1.xpose.msra.mxu0 0.0
    %1209 = vmatprep.subr.mxu0 0.0
    %1210 = vmatpush1.xpose.msra.mxu0 0.0
    %1211 = vmatprep.subr.mxu0 0.0
    %1212 = vmatpush1.xpose.msra.mxu0 0.0
    %1213 = vmatprep.subr.mxu0 0.0
    %1214 = vmatpush1.xpose.msra.mxu0 0.0
    %1215 = vmatprep.subr.mxu0 0.0
    %1216 = vmatpush1.xpose.msra.mxu0 0.0
    %1217 = vmatprep.subr.mxu0 0.0
    %1218 = vmatpush1.xpose.msra.mxu0 0.0
    %1219 = vmatprep.subr.mxu0 0.0
    %1220 = vmatpush1.xpose.msra.mxu0 0.0
    %1221 = vmatprep.subr.mxu0 0.0
    %1222 = vmatpush1.xpose.msra.mxu0 0.0
    %1223 = vmatprep.subr.mxu0 0.0
    %1224 = vmatpush1.xpose.msra.mxu0 0.0
    %1225 = vmatprep.subr.mxu0 0.0
    %1226 = vmatpush1.xpose.msra.mxu0 0.0
    %1227 = vmatprep.subr.mxu0 0.0
    %1228 = vmatpush1.xpose.msra.mxu0 0.0
    %1229 = vmatprep.subr.mxu0 0.0
    %1230 = vmatpush1.xpose.msra.mxu0 0.0
    %1231 = vmatprep.subr.mxu0 0.0
    %1232 = vmatpush1.xpose.msra.mxu0 0.0
    %1233 = vmatprep.subr.mxu0 0.0
    %1234 = vmatpush1.xpose.msra.mxu0 0.0
    %1235 = vmatprep.subr.mxu0 0.0
    %1236 = vmatpush1.xpose.msra.mxu0 0.0
    %1237 = vmatprep.mubr.f32.mxu0 0.0
    %1238 = vmatmul.mubr.f32.gmra.mrb[0].mxu0 %v1169
    %v1239 = vpop.f32.mrb[0].mxu0
    %v1240 = vadd.f32 0.0, %v1239
    %v1241 = vpop.f32.mrb[0].mxu0
    %1242 = vdwg.mxu0
    %v1243 = vmul.f32 %v701, 0.35355338
    %v1244 = vmul.f32 %v778, 0.35355338
    %v1245 = vmul.f32 %v855, 0.35355338
    %v1246 = vmul.f32 %v932, 0.35355338
    %v1247 = vmul.f32 %v1009, 0.35355338
    %v1248 = vmul.f32 %v1086, 0.35355338
    %v1249 = vmul.f32 %v1163, 0.35355338
    %v1250 = vmul.f32 %v1240, 0.35355338
    %v1251 = vadd.f32 %v1243, %v41
    %v1252 = vadd.f32 %v1244, %v41
    %v1253 = vadd.f32 %v1245, %v41
    %v1254 = vadd.f32 %v1246, %v41
    %v1255 = vadd.f32 %v1247, %v42
    %v1256 = vadd.f32 %v1248, %v42
    %v1257 = vadd.f32 %v1249, %v42
    %v1258 = vadd.f32 %v1250, %v42
    %v1259 = vsel %vm629, %v1251, -inf
    %1260 = vmax.xlane.f32.xlu0 %v1259
    %v1261 = vpop.xlane.xlu0 %1260
    %v1262 = vsel %vm629, %v1252, -inf
    %1263 = vmax.xlane.f32.xlu0 %v1262
    %v1264 = vpop.xlane.xlu0 %1263
    %v1265 = vsel %vm629, %v1253, -inf
    %1266 = vmax.xlane.f32.xlu0 %v1265
    %v1267 = vpop.xlane.xlu0 %1266
    %v1268 = vsel %vm629, %v1254, -inf
    %1269 = vmax.xlane.f32.xlu0 %v1268
    %v1270 = vpop.xlane.xlu0 %1269
    %v1271 = vsel %vm629, %v1255, -inf
    %1272 = vmax.xlane.f32.xlu0 %v1271
    %v1273 = vpop.xlane.xlu0 %1272
    %v1274 = vsel %vm629, %v1256, -inf
    %1275 = vmax.xlane.f32.xlu0 %v1274
    %v1276 = vpop.xlane.xlu0 %1275
    %v1277 = vsel %vm629, %v1257, -inf
    %1278 = vmax.xlane.f32.xlu0 %v1277
    %v1279 = vpop.xlane.xlu0 %1278
    %v1280 = vsel %vm629, %v1258, -inf
    %1281 = vmax.xlane.f32.xlu0 %v1280
    %v1282 = vpop.xlane.xlu0 %1281
    %v1283 = vsub.f32 %v1251, %v1261
    %v1284 = vsub.f32 %v1252, %v1264
    %v1285 = vsub.f32 %v1253, %v1267
    %v1286 = vsub.f32 %v1254, %v1270
    %v1287 = vsub.f32 %v1255, %v1273
    %v1288 = vsub.f32 %v1256, %v1276
    %v1289 = vsub.f32 %v1257, %v1279
    %v1290 = vsub.f32 %v1258, %v1282
    %v1291 = vmul.f32 %v1283, 1.442695
    %v1292 = vpow.pop %v1291
    %v1293 = vmul.f32 %v1284, 1.442695
    %v1294 = vpow.pop %v1293
    %v1295 = vmul.f32 %v1285, 1.442695
    %v1296 = vpow.pop %v1295
    %v1297 = vmul.f32 %v1286, 1.442695
    %v1298 = vpow.pop %v1297
    %v1299 = vmul.f32 %v1287, 1.442695
    %v1300 = vpow.pop %v1299
    %v1301 = vmul.f32 %v1288, 1.442695
    %v1302 = vpow.pop %v1301
    %v1303 = vmul.f32 %v1289, 1.442695
    %v1304 = vpow.pop %v1303
    %v1305 = vmul.f32 %v1290, 1.442695
    %v1306 = vpow.pop %v1305
    %v1307 = vsel %vm629, %v1292, 0.0
    %1308 = vadd.xlane.f32.xlu0 %v1307
    %v1309 = vpop.xlane.xlu0 %1308
    %v1310 = vsel %vm629, %v1294, 0.0
    %1311 = vadd.xlane.f32.xlu0 %v1310
    %v1312 = vpop.xlane.xlu0 %1311
    %v1313 = vsel %vm629, %v1296, 0.0
    %1314 = vadd.xlane.f32.xlu0 %v1313
    %v1315 = vpop.xlane.xlu0 %1314
    %v1316 = vsel %vm629, %v1298, 0.0
    %1317 = vadd.xlane.f32.xlu0 %v1316
    %v1318 = vpop.xlane.xlu0 %1317
    %v1319 = vsel %vm629, %v1300, 0.0
    %1320 = vadd.xlane.f32.xlu0 %v1319
    %v1321 = vpop.xlane.xlu0 %1320
    %v1322 = vsel %vm629, %v1302, 0.0
    %1323 = vadd.xlane.f32.xlu0 %v1322
    %v1324 = vpop.xlane.xlu0 %1323
    %v1325 = vsel %vm629, %v1304, 0.0
    %1326 = vadd.xlane.f32.xlu0 %v1325
    %v1327 = vpop.xlane.xlu0 %1326
    %v1328 = vsel %vm629, %v1306, 0.0
    %1329 = vadd.xlane.f32.xlu0 %v1328
    %v1330 = vpop.xlane.xlu0 %1329
    %v1331 = vrcp.pop %v1309
    %v1332 = vmul.f32 %v1292, %v1331
    %v1333 = vrcp.pop %v1312
    %v1334 = vmul.f32 %v1294, %v1333
    %v1335 = vrcp.pop %v1315
    %v1336 = vmul.f32 %v1296, %v1335
    %v1337 = vrcp.pop %v1318
    %v1338 = vmul.f32 %v1298, %v1337
    %v1339 = vrcp.pop %v1321
    %v1340 = vmul.f32 %v1300, %v1339
    %v1341 = vrcp.pop %v1324
    %v1342 = vmul.f32 %v1302, %v1341
    %v1343 = vrcp.pop %v1327
    %v1344 = vmul.f32 %v1304, %v1343
    %v1345 = vrcp.pop %v1330
    %v1346 = vmul.f32 %v1306, %v1345
    %1347 = vst.msk [vmem:[#allocation4] sm:$0xff] %vm629, %v1332
    %1348 = vst.msk [vmem:[#allocation4 + $0x8] sm:$0xff] %vm629, %v1334
    %1349 = vst.msk [vmem:[#allocation4 + $0x10] sm:$0xff] %vm629, %v1336
    %1350 = vst.msk [vmem:[#allocation4 + $0x18] sm:$0xff] %vm629, %v1338
    %1351 = vst.msk [vmem:[#allocation4 + $0x20] sm:$0xff] %vm629, %v1340
    %1352 = vst.msk [vmem:[#allocation4 + $0x28] sm:$0xff] %vm629, %v1342
    %1353 = vst.msk [vmem:[#allocation4 + $0x30] sm:$0xff] %vm629, %v1344
    %1354 = vst.msk [vmem:[#allocation4 + $0x38] sm:$0xff] %vm629, %v1346
    %1355 = vrot.lane.b32.xlu0 %v130, 112
    %v1356 = vpop.permute.xlu0 %1355
    %v1359 = vsel %vm629, %v1332, 0
    %1361 = vmatprep.subr.mxu0 0.0
    %1362 = vmatpush1.msra.mxu0 %v1356
    %1363 = vmatprep.subr.mxu0 0.0
    %1364 = vmatpush1.msra.mxu0 0.0
    %1365 = vmatprep.subr.mxu0 0.0
    %1366 = vmatpush1.msra.mxu0 0.0
    %1367 = vmatprep.subr.mxu0 0.0
    %1368 = vmatpush1.msra.mxu0 0.0
    %1369 = vmatprep.subr.mxu0 0.0
    %1370 = vmatpush1.msra.mxu0 0.0
    %1371 = vmatprep.subr.mxu0 0.0
    %1372 = vmatpush1.msra.mxu0 0.0
    %1373 = vmatprep.subr.mxu0 0.0
    %1374 = vmatpush1.msra.mxu0 0.0
    %1375 = vmatprep.subr.mxu0 0.0
    %1376 = vmatpush1.msra.mxu0 0.0
    %1377 = vmatprep.subr.mxu0 0.0
    %1378 = vmatpush1.msra.mxu0 0.0
    %1379 = vmatprep.subr.mxu0 0.0
    %1380 = vmatpush1.msra.mxu0 0.0
    %1381 = vmatprep.subr.mxu0 0.0
    %1382 = vmatpush1.msra.mxu0 0.0
    %1383 = vmatprep.subr.mxu0 0.0
    %1384 = vmatpush1.msra.mxu0 0.0
    %1385 = vmatprep.subr.mxu0 0.0
    %1386 = vmatpush1.msra.mxu0 0.0
    %1387 = vmatprep.subr.mxu0 0.0
    %1388 = vmatpush1.msra.mxu0 0.0
    %1389 = vmatprep.subr.mxu0 0.0
    %1390 = vmatpush1.msra.mxu0 0.0
    %1391 = vmatprep.subr.mxu0 0.0
    %1392 = vmatpush1.msra.mxu0 0.0
    %1393 = vmatprep.subr.mxu0 0.0
    %1394 = vmatpush1.msra.mxu0 0.0
    %1395 = vmatprep.subr.mxu0 0.0
    %1396 = vmatpush1.msra.mxu0 0.0
    %1397 = vmatprep.subr.mxu0 0.0
    %1398 = vmatpush1.msra.mxu0 0.0
    %1399 = vmatprep.subr.mxu0 0.0
    %1400 = vmatpush1.msra.mxu0 0.0
    %1401 = vmatprep.subr.mxu0 0.0
    %1402 = vmatpush1.msra.mxu0 0.0
    %1403 = vmatprep.subr.mxu0 0.0
    %1404 = vmatpush1.msra.mxu0 0.0
    %1405 = vmatprep.subr.mxu0 0.0
    %1406 = vmatpush1.msra.mxu0 0.0
    %1407 = vmatprep.subr.mxu0 0.0
    %1408 = vmatpush1.msra.mxu0 0.0
    %1409 = vmatprep.subr.mxu0 0.0
    %1410 = vmatpush1.msra.mxu0 0.0
    %1411 = vmatprep.subr.mxu0 0.0
    %1412 = vmatpush1.msra.mxu0 0.0
    %1413 = vmatprep.subr.mxu0 0.0
    %1414 = vmatpush1.msra.mxu0 0.0
    %1415 = vmatprep.subr.mxu0 0.0
    %1416 = vmatpush1.msra.mxu0 0.0
    %1417 = vmatprep.subr.mxu0 0.0
    %1418 = vmatpush1.msra.mxu0 0.0
    %1419 = vmatprep.subr.mxu0 0.0
    %1420 = vmatpush1.msra.mxu0 0.0
    %1421 = vmatprep.subr.mxu0 0.0
    %1422 = vmatpush1.msra.mxu0 0.0
    %1423 = vmatprep.subr.mxu0 0.0
    %1424 = vmatpush1.msra.mxu0 0.0
    %1425 = vmatprep.mubr.f32.mxu0 0.0
    %1426 = vmatmul.mubr.f32.gmra.mrb[0].mxu0 %v1359
    %v1427 = vpop.f32.mrb[0].mxu0
    %v1428 = vadd.f32 0.0, %v1427
    %v1429 = vpop.f32.mrb[0].mxu0
    %1430 = vdwg.mxu0
    %1431 = vrot.lane.b32.xlu0 %v200, 112
    %v1432 = vpop.permute.xlu0 %1431
    %v1435 = vsel %vm629, %v1334, 0
    %1437 = vmatprep.subr.mxu0 0.0
    %1438 = vmatpush1.msra.mxu0 %v1432
    %1439 = vmatprep.subr.mxu0 0.0
    %1440 = vmatpush1.msra.mxu0 0.0
    %1441 = vmatprep.subr.mxu0 0.0
    %1442 = vmatpush1.msra.mxu0 0.0
    %1443 = vmatprep.subr.mxu0 0.0
    %1444 = vmatpush1.msra.mxu0 0.0
    %1445 = vmatprep.subr.mxu0 0.0
    %1446 = vmatpush1.msra.mxu0 0.0
    %1447 = vmatprep.subr.mxu0 0.0
    %1448 = vmatpush1.msra.mxu0 0.0
    %1449 = vmatprep.subr.mxu0 0.0
    %1450 = vmatpush1.msra.mxu0 0.0
    %1451 = vmatprep.subr.mxu0 0.0
    %1452 = vmatpush1.msra.mxu0 0.0
    %1453 = vmatprep.subr.mxu0 0.0
    %1454 = vmatpush1.msra.mxu0 0.0
    %1455 = vmatprep.subr.mxu0 0.0
    %1456 = vmatpush1.msra.mxu0 0.0
    %1457 = vmatprep.subr.mxu0 0.0
    %1458 = vmatpush1.msra.mxu0 0.0
    %1459 = vmatprep.subr.mxu0 0.0
    %1460 = vmatpush1.msra.mxu0 0.0
    %1461 = vmatprep.subr.mxu0 0.0
    %1462 = vmatpush1.msra.mxu0 0.0
    %1463 = vmatprep.subr.mxu0 0.0
    %1464 = vmatpush1.msra.mxu0 0.0
    %1465 = vmatprep.subr.mxu0 0.0
    %1466 = vmatpush1.msra.mxu0 0.0
    %1467 = vmatprep.subr.mxu0 0.0
    %1468 = vmatpush1.msra.mxu0 0.0
    %1469 = vmatprep.subr.mxu0 0.0
    %1470 = vmatpush1.msra.mxu0 0.0
    %1471 = vmatprep.subr.mxu0 0.0
    %1472 = vmatpush1.msra.mxu0 0.0
    %1473 = vmatprep.subr.mxu0 0.0
    %1474 = vmatpush1.msra.mxu0 0.0
    %1475 = vmatprep.subr.mxu0 0.0
    %1476 = vmatpush1.msra.mxu0 0.0
    %1477 = vmatprep.subr.mxu0 0.0
    %1478 = vmatpush1.msra.mxu0 0.0
    %1479 = vmatprep.subr.mxu0 0.0
    %1480 = vmatpush1.msra.mxu0 0.0
    %1481 = vmatprep.subr.mxu0 0.0
    %1482 = vmatpush1.msra.mxu0 0.0
    %1483 = vmatprep.subr.mxu0 0.0
    %1484 = vmatpush1.msra.mxu0 0.0
    %1485 = vmatprep.subr.mxu0 0.0
    %1486 = vmatpush1.msra.mxu0 0.0
    %1487 = vmatprep.subr.mxu0 0.0
    %1488 = vmatpush1.msra.mxu0 0.0
    %1489 = vmatprep.subr.mxu0 0.0
    %1490 = vmatpush1.msra.mxu0 0.0
    %1491 = vmatprep.subr.mxu0 0.0
    %1492 = vmatpush1.msra.mxu0 0.0
    %1493 = vmatprep.subr.mxu0 0.0
    %1494 = vmatpush1.msra.mxu0 0.0
    %1495 = vmatprep.subr.mxu0 0.0
    %1496 = vmatpush1.msra.mxu0 0.0
    %1497 = vmatprep.subr.mxu0 0.0
    %1498 = vmatpush1.msra.mxu0 0.0
    %1499 = vmatprep.subr.mxu0 0.0
    %1500 = vmatpush1.msra.mxu0 0.0
    %1501 = vmatprep.mubr.f32.mxu0 0.0
    %1502 = vmatmul.mubr.f32.gmra.mrb[0].mxu0 %v1435
    %v1503 = vpop.f32.mrb[0].mxu0
    %v1504 = vadd.f32 0.0, %v1503
    %v1505 = vpop.f32.mrb[0].mxu0
    %1506 = vdwg.mxu0
    %1507 = vrot.lane.b32.xlu0 %v270, 112
    %v1508 = vpop.permute.xlu0 %1507
    %v1511 = vsel %vm629, %v1336, 0
    %1513 = vmatprep.subr.mxu0 0.0
    %1514 = vmatpush1.msra.mxu0 %v1508
    %1515 = vmatprep.subr.mxu0 0.0
    %1516 = vmatpush1.msra.mxu0 0.0
    %1517 = vmatprep.subr.mxu0 0.0
    %1518 = vmatpush1.msra.mxu0 0.0
    %1519 = vmatprep.subr.mxu0 0.0
    %1520 = vmatpush1.msra.mxu0 0.0
    %1521 = vmatprep.subr.mxu0 0.0
    %1522 = vmatpush1.msra.mxu0 0.0
    %1523 = vmatprep.subr.mxu0 0.0
    %1524 = vmatpush1.msra.mxu0 0.0
    %1525 = vmatprep.subr.mxu0 0.0
    %1526 = vmatpush1.msra.mxu0 0.0
    %1527 = vmatprep.subr.mxu0 0.0
    %1528 = vmatpush1.msra.mxu0 0.0
    %1529 = vmatprep.subr.mxu0 0.0
    %1530 = vmatpush1.msra.mxu0 0.0
    %1531 = vmatprep.subr.mxu0 0.0
    %1532 = vmatpush1.msra.mxu0 0.0
    %1533 = vmatprep.subr.mxu0 0.0
    %1534 = vmatpush1.msra.mxu0 0.0
    %1535 = vmatprep.subr.mxu0 0.0
    %1536 = vmatpush1.msra.mxu0 0.0
    %1537 = vmatprep.subr.mxu0 0.0
    %1538 = vmatpush1.msra.mxu0 0.0
    %1539 = vmatprep.subr.mxu0 0.0
    %1540 = vmatpush1.msra.mxu0 0.0
    %1541 = vmatprep.subr.mxu0 0.0
    %1542 = vmatpush1.msra.mxu0 0.0
    %1543 = vmatprep.subr.mxu0 0.0
    %1544 = vmatpush1.msra.mxu0 0.0
    %1545 = vmatprep.subr.mxu0 0.0
    %1546 = vmatpush1.msra.mxu0 0.0
    %1547 = vmatprep.subr.mxu0 0.0
    %1548 = vmatpush1.msra.mxu0 0.0
    %1549 = vmatprep.subr.mxu0 0.0
    %1550 = vmatpush1.msra.mxu0 0.0
    %1551 = vmatprep.subr.mxu0 0.0
    %1552 = vmatpush1.msra.mxu0 0.0
    %1553 = vmatprep.subr.mxu0 0.0
    %1554 = vmatpush1.msra.mxu0 0.0
    %1555 = vmatprep.subr.mxu0 0.0
    %1556 = vmatpush1.msra.mxu0 0.0
    %1557 = vmatprep.subr.mxu0 0.0
    %1558 = vmatpush1.msra.mxu0 0.0
    %1559 = vmatprep.subr.mxu0 0.0
    %1560 = vmatpush1.msra.mxu0 0.0
    %1561 = vmatprep.subr.mxu0 0.0
    %1562 = vmatpush1.msra.mxu0 0.0
    %1563 = vmatprep.subr.mxu0 0.0
    %1564 = vmatpush1.msra.mxu0 0.0
    %1565 = vmatprep.subr.mxu0 0.0
    %1566 = vmatpush1.msra.mxu0 0.0
    %1567 = vmatprep.subr.mxu0 0.0
    %1568 = vmatpush1.msra.mxu0 0.0
    %1569 = vmatprep.subr.mxu0 0.0
    %1570 = vmatpush1.msra.mxu0 0.0
    %1571 = vmatprep.subr.mxu0 0.0
    %1572 = vmatpush1.msra.mxu0 0.0
    %1573 = vmatprep.subr.mxu0 0.0
    %1574 = vmatpush1.msra.mxu0 0.0
    %1575 = vmatprep.subr.mxu0 0.0
    %1576 = vmatpush1.msra.mxu0 0.0
    %1577 = vmatprep.mubr.f32.mxu0 0.0
    %1578 = vmatmul.mubr.f32.gmra.mrb[0].mxu0 %v1511
    %v1579 = vpop.f32.mrb[0].mxu0
    %v1580 = vadd.f32 0.0, %v1579
    %v1581 = vpop.f32.mrb[0].mxu0
    %1582 = vdwg.mxu0
    %1583 = vrot.lane.b32.xlu0 %v340, 112
    %v1584 = vpop.permute.xlu0 %1583
    %v1587 = vsel %vm629, %v1338, 0
    %1589 = vmatprep.subr.mxu0 0.0
    %1590 = vmatpush1.msra.mxu0 %v1584
    %1591 = vmatprep.subr.mxu0 0.0
    %1592 = vmatpush1.msra.mxu0 0.0
    %1593 = vmatprep.subr.mxu0 0.0
    %1594 = vmatpush1.msra.mxu0 0.0
    %1595 = vmatprep.subr.mxu0 0.0
    %1596 = vmatpush1.msra.mxu0 0.0
    %1597 = vmatprep.subr.mxu0 0.0
    %1598 = vmatpush1.msra.mxu0 0.0
    %1599 = vmatprep.subr.mxu0 0.0
    %1600 = vmatpush1.msra.mxu0 0.0
    %1601 = vmatprep.subr.mxu0 0.0
    %1602 = vmatpush1.msra.mxu0 0.0
    %1603 = vmatprep.subr.mxu0 0.0
    %1604 = vmatpush1.msra.mxu0 0.0
    %1605 = vmatprep.subr.mxu0 0.0
    %1606 = vmatpush1.msra.mxu0 0.0
    %1607 = vmatprep.subr.mxu0 0.0
    %1608 = vmatpush1.msra.mxu0 0.0
    %1609 = vmatprep.subr.mxu0 0.0
    %1610 = vmatpush1.msra.mxu0 0.0
    %1611 = vmatprep.subr.mxu0 0.0
    %1612 = vmatpush1.msra.mxu0 0.0
    %1613 = vmatprep.subr.mxu0 0.0
    %1614 = vmatpush1.msra.mxu0 0.0
    %1615 = vmatprep.subr.mxu0 0.0
    %1616 = vmatpush1.msra.mxu0 0.0
    %1617 = vmatprep.subr.mxu0 0.0
    %1618 = vmatpush1.msra.mxu0 0.0
    %1619 = vmatprep.subr.mxu0 0.0
    %1620 = vmatpush1.msra.mxu0 0.0
    %1621 = vmatprep.subr.mxu0 0.0
    %1622 = vmatpush1.msra.mxu0 0.0
    %1623 = vmatprep.subr.mxu0 0.0
    %1624 = vmatpush1.msra.mxu0 0.0
    %1625 = vmatprep.subr.mxu0 0.0
    %1626 = vmatpush1.msra.mxu0 0.0
    %1627 = vmatprep.subr.mxu0 0.0
    %1628 = vmatpush1.msra.mxu0 0.0
    %1629 = vmatprep.subr.mxu0 0.0
    %1630 = vmatpush1.msra.mxu0 0.0
    %1631 = vmatprep.subr.mxu0 0.0
    %1632 = vmatpush1.msra.mxu0 0.0
    %1633 = vmatprep.subr.mxu0 0.0
    %1634 = vmatpush1.msra.mxu0 0.0
    %1635 = vmatprep.subr.mxu0 0.0
    %1636 = vmatpush1.msra.mxu0 0.0
    %1637 = vmatprep.subr.mxu0 0.0
    %1638 = vmatpush1.msra.mxu0 0.0
    %1639 = vmatprep.subr.mxu0 0.0
    %1640 = vmatpush1.msra.mxu0 0.0
    %1641 = vmatprep.subr.mxu0 0.0
    %1642 = vmatpush1.msra.mxu0 0.0
    %1643 = vmatprep.subr.mxu0 0.0
    %1644 = vmatpush1.msra.mxu0 0.0
    %1645 = vmatprep.subr.mxu0 0.0
    %1646 = vmatpush1.msra.mxu0 0.0
    %1647 = vmatprep.subr.mxu0 0.0
    %1648 = vmatpush1.msra.mxu0 0.0
    %1649 = vmatprep.subr.mxu0 0.0
    %1650 = vmatpush1.msra.mxu0 0.0
    %1651 = vmatprep.subr.mxu0 0.0
    %1652 = vmatpush1.msra.mxu0 0.0
    %1653 = vmatprep.mubr.f32.mxu0 0.0
    %1654 = vmatmul.mubr.f32.gmra.mrb[0].mxu0 %v1587
    %v1655 = vpop.f32.mrb[0].mxu0
    %v1656 = vadd.f32 0.0, %v1655
    %v1657 = vpop.f32.mrb[0].mxu0
    %1658 = vdwg.mxu0
    %1659 = vrot.lane.b32.xlu0 %v413, 112
    %v1660 = vpop.permute.xlu0 %1659
    %v1663 = vsel %vm629, %v1340, 0
    %1665 = vmatprep.subr.mxu0 0.0
    %1666 = vmatpush1.msra.mxu0 %v1660
    %1667 = vmatprep.subr.mxu0 0.0
    %1668 = vmatpush1.msra.mxu0 0.0
    %1669 = vmatprep.subr.mxu0 0.0
    %1670 = vmatpush1.msra.mxu0 0.0
    %1671 = vmatprep.subr.mxu0 0.0
    %1672 = vmatpush1.msra.mxu0 0.0
    %1673 = vmatprep.subr.mxu0 0.0
    %1674 = vmatpush1.msra.mxu0 0.0
    %1675 = vmatprep.subr.mxu0 0.0
    %1676 = vmatpush1.msra.mxu0 0.0
    %1677 = vmatprep.subr.mxu0 0.0
    %1678 = vmatpush1.msra.mxu0 0.0
    %1679 = vmatprep.subr.mxu0 0.0
    %1680 = vmatpush1.msra.mxu0 0.0
    %1681 = vmatprep.subr.mxu0 0.0
    %1682 = vmatpush1.msra.mxu0 0.0
    %1683 = vmatprep.subr.mxu0 0.0
    %1684 = vmatpush1.msra.mxu0 0.0
    %1685 = vmatprep.subr.mxu0 0.0
    %1686 = vmatpush1.msra.mxu0 0.0
    %1687 = vmatprep.subr.mxu0 0.0
    %1688 = vmatpush1.msra.mxu0 0.0
    %1689 = vmatprep.subr.mxu0 0.0
    %1690 = vmatpush1.msra.mxu0 0.0
    %1691 = vmatprep.subr.mxu0 0.0
    %1692 = vmatpush1.msra.mxu0 0.0
    %1693 = vmatprep.subr.mxu0 0.0
    %1694 = vmatpush1.msra.mxu0 0.0
    %1695 = vmatprep.subr.mxu0 0.0
    %1696 = vmatpush1.msra.mxu0 0.0
    %1697 = vmatprep.subr.mxu0 0.0
    %1698 = vmatpush1.msra.mxu0 0.0
    %1699 = vmatprep.subr.mxu0 0.0
    %1700 = vmatpush1.msra.mxu0 0.0
    %1701 = vmatprep.subr.mxu0 0.0
    %1702 = vmatpush1.msra.mxu0 0.0
    %1703 = vmatprep.subr.mxu0 0.0
    %1704 = vmatpush1.msra.mxu0 0.0
    %1705 = vmatprep.subr.mxu0 0.0
    %1706 = vmatpush1.msra.mxu0 0.0
    %1707 = vmatprep.subr.mxu0 0.0
    %1708 = vmatpush1.msra.mxu0 0.0
    %1709 = vmatprep.subr.mxu0 0.0
    %1710 = vmatpush1.msra.mxu0 0.0
    %1711 = vmatprep.subr.mxu0 0.0
    %1712 = vmatpush1.msra.mxu0 0.0
    %1713 = vmatprep.subr.mxu0 0.0
    %1714 = vmatpush1.msra.mxu0 0.0
    %1715 = vmatprep.subr.mxu0 0.0
    %1716 = vmatpush1.msra.mxu0 0.0
    %1717 = vmatprep.subr.mxu0 0.0
    %1718 = vmatpush1.msra.mxu0 0.0
    %1719 = vmatprep.subr.mxu0 0.0
    %1720 = vmatpush1.msra.mxu0 0.0
    %1721 = vmatprep.subr.mxu0 0.0
    %1722 = vmatpush1.msra.mxu0 0.0
    %1723 = vmatprep.subr.mxu0 0.0
    %1724 = vmatpush1.msra.mxu0 0.0
    %1725 = vmatprep.subr.mxu0 0.0
    %1726 = vmatpush1.msra.mxu0 0.0
    %1727 = vmatprep.subr.mxu0 0.0
    %1728 = vmatpush1.msra.mxu0 0.0
    %1729 = vmatprep.mubr.f32.mxu0 0.0
    %1730 = vmatmul.mubr.f32.gmra.mrb[0].mxu0 %v1663
    %v1731 = vpop.f32.mrb[0].mxu0
    %v1732 = vadd.f32 0.0, %v1731
    %v1733 = vpop.f32.mrb[0].mxu0
    %1734 = vdwg.mxu0
    %1735 = vrot.lane.b32.xlu0 %v483, 112
    %v1736 = vpop.permute.xlu0 %1735
    %v1739 = vsel %vm629, %v1342, 0
    %1741 = vmatprep.subr.mxu0 0.0
    %1742 = vmatpush1.msra.mxu0 %v1736
    %1743 = vmatprep.subr.mxu0 0.0
    %1744 = vmatpush1.msra.mxu0 0.0
    %1745 = vmatprep.subr.mxu0 0.0
    %1746 = vmatpush1.msra.mxu0 0.0
    %1747 = vmatprep.subr.mxu0 0.0
    %1748 = vmatpush1.msra.mxu0 0.0
    %1749 = vmatprep.subr.mxu0 0.0
    %1750 = vmatpush1.msra.mxu0 0.0
    %1751 = vmatprep.subr.mxu0 0.0
    %1752 = vmatpush1.msra.mxu0 0.0
    %1753 = vmatprep.subr.mxu0 0.0
    %1754 = vmatpush1.msra.mxu0 0.0
    %1755 = vmatprep.subr.mxu0 0.0
    %1756 = vmatpush1.msra.mxu0 0.0
    %1757 = vmatprep.subr.mxu0 0.0
    %1758 = vmatpush1.msra.mxu0 0.0
    %1759 = vmatprep.subr.mxu0 0.0
    %1760 = vmatpush1.msra.mxu0 0.0
    %1761 = vmatprep.subr.mxu0 0.0
    %1762 = vmatpush1.msra.mxu0 0.0
    %1763 = vmatprep.subr.mxu0 0.0
    %1764 = vmatpush1.msra.mxu0 0.0
    %1765 = vmatprep.subr.mxu0 0.0
    %1766 = vmatpush1.msra.mxu0 0.0
    %1767 = vmatprep.subr.mxu0 0.0
    %1768 = vmatpush1.msra.mxu0 0.0
    %1769 = vmatprep.subr.mxu0 0.0
    %1770 = vmatpush1.msra.mxu0 0.0
    %1771 = vmatprep.subr.mxu0 0.0
    %1772 = vmatpush1.msra.mxu0 0.0
    %1773 = vmatprep.subr.mxu0 0.0
    %1774 = vmatpush1.msra.mxu0 0.0
    %1775 = vmatprep.subr.mxu0 0.0
    %1776 = vmatpush1.msra.mxu0 0.0
    %1777 = vmatprep.subr.mxu0 0.0
    %1778 = vmatpush1.msra.mxu0 0.0
    %1779 = vmatprep.subr.mxu0 0.0
    %1780 = vmatpush1.msra.mxu0 0.0
    %1781 = vmatprep.subr.mxu0 0.0
    %1782 = vmatpush1.msra.mxu0 0.0
    %1783 = vmatprep.subr.mxu0 0.0
    %1784 = vmatpush1.msra.mxu0 0.0
    %1785 = vmatprep.subr.mxu0 0.0
    %1786 = vmatpush1.msra.mxu0 0.0
    %1787 = vmatprep.subr.mxu0 0.0
    %1788 = vmatpush1.msra.mxu0 0.0
    %1789 = vmatprep.subr.mxu0 0.0
    %1790 = vmatpush1.msra.mxu0 0.0
    %1791 = vmatprep.subr.mxu0 0.0
    %1792 = vmatpush1.msra.mxu0 0.0
    %1793 = vmatprep.subr.mxu0 0.0
    %1794 = vmatpush1.msra.mxu0 0.0
    %1795 = vmatprep.subr.mxu0 0.0
    %1796 = vmatpush1.msra.mxu0 0.0
    %1797 = vmatprep.subr.mxu0 0.0
    %1798 = vmatpush1.msra.mxu0 0.0
    %1799 = vmatprep.subr.mxu0 0.0
    %1800 = vmatpush1.msra.mxu0 0.0
    %1801 = vmatprep.subr.mxu0 0.0
    %1802 = vmatpush1.msra.mxu0 0.0
    %1803 = vmatprep.subr.mxu0 0.0
    %1804 = vmatpush1.msra.mxu0 0.0
    %1805 = vmatprep.mubr.f32.mxu0 0.0
    %1806 = vmatmul.mubr.f32.gmra.mrb[0].mxu0 %v1739
    %v1807 = vpop.f32.mrb[0].mxu0
    %v1808 = vadd.f32 0.0, %v1807
    %v1809 = vpop.f32.mrb[0].mxu0
    %1810 = vdwg.mxu0
    %1811 = vrot.lane.b32.xlu0 %v553, 112
    %v1812 = vpop.permute.xlu0 %1811
    %v1815 = vsel %vm629, %v1344, 0
    %1817 = vmatprep.subr.mxu0 0.0
    %1818 = vmatpush1.msra.mxu0 %v1812
    %1819 = vmatprep.subr.mxu0 0.0
    %1820 = vmatpush1.msra.mxu0 0.0
    %1821 = vmatprep.subr.mxu0 0.0
    %1822 = vmatpush1.msra.mxu0 0.0
    %1823 = vmatprep.subr.mxu0 0.0
    %1824 = vmatpush1.msra.mxu0 0.0
    %1825 = vmatprep.subr.mxu0 0.0
    %1826 = vmatpush1.msra.mxu0 0.0
    %1827 = vmatprep.subr.mxu0 0.0
    %1828 = vmatpush1.msra.mxu0 0.0
    %1829 = vmatprep.subr.mxu0 0.0
    %1830 = vmatpush1.msra.mxu0 0.0
    %1831 = vmatprep.subr.mxu0 0.0
    %1832 = vmatpush1.msra.mxu0 0.0
    %1833 = vmatprep.subr.mxu0 0.0
    %1834 = vmatpush1.msra.mxu0 0.0
    %1835 = vmatprep.subr.mxu0 0.0
    %1836 = vmatpush1.msra.mxu0 0.0
    %1837 = vmatprep.subr.mxu0 0.0
    %1838 = vmatpush1.msra.mxu0 0.0
    %1839 = vmatprep.subr.mxu0 0.0
    %1840 = vmatpush1.msra.mxu0 0.0
    %1841 = vmatprep.subr.mxu0 0.0
    %1842 = vmatpush1.msra.mxu0 0.0
    %1843 = vmatprep.subr.mxu0 0.0
    %1844 = vmatpush1.msra.mxu0 0.0
    %1845 = vmatprep.subr.mxu0 0.0
    %1846 = vmatpush1.msra.mxu0 0.0
    %1847 = vmatprep.subr.mxu0 0.0
    %1848 = vmatpush1.msra.mxu0 0.0
    %1849 = vmatprep.subr.mxu0 0.0
    %1850 = vmatpush1.msra.mxu0 0.0
    %1851 = vmatprep.subr.mxu0 0.0
    %1852 = vmatpush1.msra.mxu0 0.0
    %1853 = vmatprep.subr.mxu0 0.0
    %1854 = vmatpush1.msra.mxu0 0.0
    %1855 = vmatprep.subr.mxu0 0.0
    %1856 = vmatpush1.msra.mxu0 0.0
    %1857 = vmatprep.subr.mxu0 0.0
    %1858 = vmatpush1.msra.mxu0 0.0
    %1859 = vmatprep.subr.mxu0 0.0
    %1860 = vmatpush1.msra.mxu0 0.0
    %1861 = vmatprep.subr.mxu0 0.0
    %1862 = vmatpush1.msra.mxu0 0.0
    %1863 = vmatprep.subr.mxu0 0.0
    %1864 = vmatpush1.msra.mxu0 0.0
    %1865 = vmatprep.subr.mxu0 0.0
    %1866 = vmatpush1.msra.mxu0 0.0
    %1867 = vmatprep.subr.mxu0 0.0
    %1868 = vmatpush1.msra.mxu0 0.0
    %1869 = vmatprep.subr.mxu0 0.0
    %1870 = vmatpush1.msra.mxu0 0.0
    %1871 = vmatprep.subr.mxu0 0.0
    %1872 = vmatpush1.msra.mxu0 0.0
    %1873 = vmatprep.subr.mxu0 0.0
    %1874 = vmatpush1.msra.mxu0 0.0
    %1875 = vmatprep.subr.mxu0 0.0
    %1876 = vmatpush1.msra.mxu0 0.0
    %1877 = vmatprep.subr.mxu0 0.0
    %1878 = vmatpush1.msra.mxu0 0.0
    %1879 = vmatprep.subr.mxu0 0.0
    %1880 = vmatpush1.msra.mxu0 0.0
    %1881 = vmatprep.mubr.f32.mxu0 0.0
    %1882 = vmatmul.mubr.f32.gmra.mrb[0].mxu0 %v1815
    %v1883 = vpop.f32.mrb[0].mxu0
    %v1884 = vadd.f32 0.0, %v1883
    %v1885 = vpop.f32.mrb[0].mxu0
    %1886 = vdwg.mxu0
    %1887 = vrot.lane.b32.xlu0 %v623, 112
    %v1888 = vpop.permute.xlu0 %1887
    %v1891 = vsel %vm629, %v1346, 0
    %1893 = vmatprep.subr.mxu0 0.0
    %1894 = vmatpush1.msra.mxu0 %v1888
    %1895 = vmatprep.subr.mxu0 0.0
    %1896 = vmatpush1.msra.mxu0 0.0
    %1897 = vmatprep.subr.mxu0 0.0
    %1898 = vmatpush1.msra.mxu0 0.0
    %1899 = vmatprep.subr.mxu0 0.0
    %1900 = vmatpush1.msra.mxu0 0.0
    %1901 = vmatprep.subr.mxu0 0.0
    %1902 = vmatpush1.msra.mxu0 0.0
    %1903 = vmatprep.subr.mxu0 0.0
    %1904 = vmatpush1.msra.mxu0 0.0
    %1905 = vmatprep.subr.mxu0 0.0
    %1906 = vmatpush1.msra.mxu0 0.0
    %1907 = vmatprep.subr.mxu0 0.0
    %1908 = vmatpush1.msra.mxu0 0.0
    %1909 = vmatprep.subr.mxu0 0.0
    %1910 = vmatpush1.msra.mxu0 0.0
    %1911 = vmatprep.subr.mxu0 0.0
    %1912 = vmatpush1.msra.mxu0 0.0
    %1913 = vmatprep.subr.mxu0 0.0
    %1914 = vmatpush1.msra.mxu0 0.0
    %1915 = vmatprep.subr.mxu0 0.0
    %1916 = vmatpush1.msra.mxu0 0.0
    %1917 = vmatprep.subr.mxu0 0.0
    %1918 = vmatpush1.msra.mxu0 0.0
    %1919 = vmatprep.subr.mxu0 0.0
    %1920 = vmatpush1.msra.mxu0 0.0
    %1921 = vmatprep.subr.mxu0 0.0
    %1922 = vmatpush1.msra.mxu0 0.0
    %1923 = vmatprep.subr.mxu0 0.0
    %1924 = vmatpush1.msra.mxu0 0.0
    %1925 = vmatprep.subr.mxu0 0.0
    %1926 = vmatpush1.msra.mxu0 0.0
    %1927 = vmatprep.subr.mxu0 0.0
    %1928 = vmatpush1.msra.mxu0 0.0
    %1929 = vmatprep.subr.mxu0 0.0
    %1930 = vmatpush1.msra.mxu0 0.0
    %1931 = vmatprep.subr.mxu0 0.0
    %1932 = vmatpush1.msra.mxu0 0.0
    %1933 = vmatprep.subr.mxu0 0.0
    %1934 = vmatpush1.msra.mxu0 0.0
    %1935 = vmatprep.subr.mxu0 0.0
    %1936 = vmatpush1.msra.mxu0 0.0
    %1937 = vmatprep.subr.mxu0 0.0
    %1938 = vmatpush1.msra.mxu0 0.0
    %1939 = vmatprep.subr.mxu0 0.0
    %1940 = vmatpush1.msra.mxu0 0.0
    %1941 = vmatprep.subr.mxu0 0.0
    %1942 = vmatpush1.msra.mxu0 0.0
    %1943 = vmatprep.subr.mxu0 0.0
    %1944 = vmatpush1.msra.mxu0 0.0
    %1945 = vmatprep.subr.mxu0 0.0
    %1946 = vmatpush1.msra.mxu0 0.0
    %1947 = vmatprep.subr.mxu0 0.0
    %1948 = vmatpush1.msra.mxu0 0.0
    %1949 = vmatprep.subr.mxu0 0.0
    %1950 = vmatpush1.msra.mxu0 0.0
    %1951 = vmatprep.subr.mxu0 0.0
    %1952 = vmatpush1.msra.mxu0 0.0
    %1953 = vmatprep.subr.mxu0 0.0
    %1954 = vmatpush1.msra.mxu0 0.0
    %1955 = vmatprep.subr.mxu0 0.0
    %1956 = vmatpush1.msra.mxu0 0.0
    %1957 = vmatprep.mubr.f32.mxu0 0.0
    %1958 = vmatmul.mubr.f32.gmra.mrb[0].mxu0 %v1891
    %v1959 = vpop.f32.mrb[0].mxu0
    %v1960 = vadd.f32 0.0, %v1959
    %v1961 = vpop.f32.mrb[0].mxu0
    %1962 = vdwg.mxu0
    %v1963 = vld [vmem:[%s3] sm:$0xff]
    %v1964 = vld [vmem:[%s3 + $0x8] sm:$0xff]
    %v1965 = vld [vmem:[%s3 + $0x10] sm:$0xff]
    %v1966 = vld [vmem:[%s3 + $0x18] sm:$0xff]
    %v1968 = vsel %vm629, %v1428, 0
    %1970 = vmatprep.subr.mxu0 0.0
    %1971 = vmatpush1.msra.mxu0 %v1963
    %1972 = vmatprep.subr.mxu0 0.0
    %1973 = vmatpush1.msra.mxu0 0.0
    %1974 = vmatprep.subr.mxu0 0.0
    %1975 = vmatpush1.msra.mxu0 0.0
    %1976 = vmatprep.subr.mxu0 0.0
    %1977 = vmatpush1.msra.mxu0 0.0
    %1978 = vmatprep.subr.mxu0 0.0
    %1979 = vmatpush1.msra.mxu0 0.0
    %1980 = vmatprep.subr.mxu0 0.0
    %1981 = vmatpush1.msra.mxu0 0.0
    %1982 = vmatprep.subr.mxu0 0.0
    %1983 = vmatpush1.msra.mxu0 0.0
    %1984 = vmatprep.subr.mxu0 0.0
    %1985 = vmatpush1.msra.mxu0 0.0
    %1986 = vmatprep.subr.mxu0 0.0
    %1987 = vmatpush1.msra.mxu0 0.0
    %1988 = vmatprep.subr.mxu0 0.0
    %1989 = vmatpush1.msra.mxu0 0.0
    %1990 = vmatprep.subr.mxu0 0.0
    %1991 = vmatpush1.msra.mxu0 0.0
    %1992 = vmatprep.subr.mxu0 0.0
    %1993 = vmatpush1.msra.mxu0 0.0
    %1994 = vmatprep.subr.mxu0 0.0
    %1995 = vmatpush1.msra.mxu0 0.0
    %1996 = vmatprep.subr.mxu0 0.0
    %1997 = vmatpush1.msra.mxu0 0.0
    %1998 = vmatprep.subr.mxu0 0.0
    %1999 = vmatpush1.msra.mxu0 0.0
    %2000 = vmatprep.subr.mxu0 0.0
    %2001 = vmatpush1.msra.mxu0 0.0
    %2002 = vmatprep.subr.mxu0 0.0
    %2003 = vmatpush1.msra.mxu0 0.0
    %2004 = vmatprep.subr.mxu0 0.0
    %2005 = vmatpush1.msra.mxu0 0.0
    %2006 = vmatprep.subr.mxu0 0.0
    %2007 = vmatpush1.msra.mxu0 0.0
    %2008 = vmatprep.subr.mxu0 0.0
    %2009 = vmatpush1.msra.mxu0 0.0
    %2010 = vmatprep.subr.mxu0 0.0
    %2011 = vmatpush1.msra.mxu0 0.0
    %2012 = vmatprep.subr.mxu0 0.0
    %2013 = vmatpush1.msra.mxu0 0.0
    %2014 = vmatprep.subr.mxu0 0.0
    %2015 = vmatpush1.msra.mxu0 0.0
    %2016 = vmatprep.subr.mxu0 0.0
    %2017 = vmatpush1.msra.mxu0 0.0
    %2018 = vmatprep.subr.mxu0 0.0
    %2019 = vmatpush1.msra.mxu0 0.0
    %2020 = vmatprep.subr.mxu0 0.0
    %2021 = vmatpush1.msra.mxu0 0.0
    %2022 = vmatprep.subr.mxu0 0.0
    %2023 = vmatpush1.msra.mxu0 0.0
    %2024 = vmatprep.subr.mxu0 0.0
    %2025 = vmatpush1.msra.mxu0 0.0
    %2026 = vmatprep.subr.mxu0 0.0
    %2027 = vmatpush1.msra.mxu0 0.0
    %2028 = vmatprep.subr.mxu0 0.0
    %2029 = vmatpush1.msra.mxu0 0.0
    %2030 = vmatprep.subr.mxu0 0.0
    %2031 = vmatpush1.msra.mxu0 0.0
    %2032 = vmatprep.subr.mxu0 0.0
    %2033 = vmatpush1.msra.mxu0 0.0
    %2034 = vmatprep.mubr.f32.mxu0 0.0
    %2035 = vmatmul.mubr.f32.gmra.mrb[0].mxu0 %v1968
    %v2036 = vpop.f32.mrb[0].mxu0
    %v2037 = vadd.f32 0.0, %v2036
    %v2038 = vpop.f32.mrb[0].mxu0
    %2039 = vdwg.mxu0
    %v2041 = vsel %vm629, %v1504, 0
    %2043 = vmatprep.subr.mxu0 0.0
    %2044 = vmatpush1.msra.mxu0 %v1964
    %2045 = vmatprep.subr.mxu0 0.0
    %2046 = vmatpush1.msra.mxu0 0.0
    %2047 = vmatprep.subr.mxu0 0.0
    %2048 = vmatpush1.msra.mxu0 0.0
    %2049 = vmatprep.subr.mxu0 0.0
    %2050 = vmatpush1.msra.mxu0 0.0
    %2051 = vmatprep.subr.mxu0 0.0
    %2052 = vmatpush1.msra.mxu0 0.0
    %2053 = vmatprep.subr.mxu0 0.0
    %2054 = vmatpush1.msra.mxu0 0.0
    %2055 = vmatprep.subr.mxu0 0.0
    %2056 = vmatpush1.msra.mxu0 0.0
    %2057 = vmatprep.subr.mxu0 0.0
    %2058 = vmatpush1.msra.mxu0 0.0
    %2059 = vmatprep.subr.mxu0 0.0
    %2060 = vmatpush1.msra.mxu0 0.0
    %2061 = vmatprep.subr.mxu0 0.0
    %2062 = vmatpush1.msra.mxu0 0.0
    %2063 = vmatprep.subr.mxu0 0.0
    %2064 = vmatpush1.msra.mxu0 0.0
    %2065 = vmatprep.subr.mxu0 0.0
    %2066 = vmatpush1.msra.mxu0 0.0
    %2067 = vmatprep.subr.mxu0 0.0
    %2068 = vmatpush1.msra.mxu0 0.0
    %2069 = vmatprep.subr.mxu0 0.0
    %2070 = vmatpush1.msra.mxu0 0.0
    %2071 = vmatprep.subr.mxu0 0.0
    %2072 = vmatpush1.msra.mxu0 0.0
    %2073 = vmatprep.subr.mxu0 0.0
    %2074 = vmatpush1.msra.mxu0 0.0
    %2075 = vmatprep.subr.mxu0 0.0
    %2076 = vmatpush1.msra.mxu0 0.0
    %2077 = vmatprep.subr.mxu0 0.0
    %2078 = vmatpush1.msra.mxu0 0.0
    %2079 = vmatprep.subr.mxu0 0.0
    %2080 = vmatpush1.msra.mxu0 0.0
    %2081 = vmatprep.subr.mxu0 0.0
    %2082 = vmatpush1.msra.mxu0 0.0
    %2083 = vmatprep.subr.mxu0 0.0
    %2084 = vmatpush1.msra.mxu0 0.0
    %2085 = vmatprep.subr.mxu0 0.0
    %2086 = vmatpush1.msra.mxu0 0.0
    %2087 = vmatprep.subr.mxu0 0.0
    %2088 = vmatpush1.msra.mxu0 0.0
    %2089 = vmatprep.subr.mxu0 0.0
    %2090 = vmatpush1.msra.mxu0 0.0
    %2091 = vmatprep.subr.mxu0 0.0
    %2092 = vmatpush1.msra.mxu0 0.0
    %2093 = vmatprep.subr.mxu0 0.0
    %2094 = vmatpush1.msra.mxu0 0.0
    %2095 = vmatprep.subr.mxu0 0.0
    %2096 = vmatpush1.msra.mxu0 0.0
    %2097 = vmatprep.subr.mxu0 0.0
    %2098 = vmatpush1.msra.mxu0 0.0
    %2099 = vmatprep.subr.mxu0 0.0
    %2100 = vmatpush1.msra.mxu0 0.0
    %2101 = vmatprep.subr.mxu0 0.0
    %2102 = vmatpush1.msra.mxu0 0.0
    %2103 = vmatprep.subr.mxu0 0.0
    %2104 = vmatpush1.msra.mxu0 0.0
    %2105 = vmatprep.subr.mxu0 0.0
    %2106 = vmatpush1.msra.mxu0 0.0
    %2107 = vmatprep.mubr.f32.mxu0 0.0
    %2108 = vmatmul.mubr.f32.gmra.mrb[0].mxu0 %v2041
    %v2109 = vpop.f32.mrb[0].mxu0
    %v2110 = vadd.f32 0.0, %v2109
    %v2111 = vpop.f32.mrb[0].mxu0
    %2112 = vdwg.mxu0
    %v2114 = vsel %vm629, %v1580, 0
    %2116 = vmatprep.subr.mxu0 0.0
    %2117 = vmatpush1.msra.mxu0 %v1965
    %2118 = vmatprep.subr.mxu0 0.0
    %2119 = vmatpush1.msra.mxu0 0.0
    %2120 = vmatprep.subr.mxu0 0.0
    %2121 = vmatpush1.msra.mxu0 0.0
    %2122 = vmatprep.subr.mxu0 0.0
    %2123 = vmatpush1.msra.mxu0 0.0
    %2124 = vmatprep.subr.mxu0 0.0
    %2125 = vmatpush1.msra.mxu0 0.0
    %2126 = vmatprep.subr.mxu0 0.0
    %2127 = vmatpush1.msra.mxu0 0.0
    %2128 = vmatprep.subr.mxu0 0.0
    %2129 = vmatpush1.msra.mxu0 0.0
    %2130 = vmatprep.subr.mxu0 0.0
    %2131 = vmatpush1.msra.mxu0 0.0
    %2132 = vmatprep.subr.mxu0 0.0
    %2133 = vmatpush1.msra.mxu0 0.0
    %2134 = vmatprep.subr.mxu0 0.0
    %2135 = vmatpush1.msra.mxu0 0.0
    %2136 = vmatprep.subr.mxu0 0.0
    %2137 = vmatpush1.msra.mxu0 0.0
    %2138 = vmatprep.subr.mxu0 0.0
    %2139 = vmatpush1.msra.mxu0 0.0
    %2140 = vmatprep.subr.mxu0 0.0
    %2141 = vmatpush1.msra.mxu0 0.0
    %2142 = vmatprep.subr.mxu0 0.0
    %2143 = vmatpush1.msra.mxu0 0.0
    %2144 = vmatprep.subr.mxu0 0.0
    %2145 = vmatpush1.msra.mxu0 0.0
    %2146 = vmatprep.subr.mxu0 0.0
    %2147 = vmatpush1.msra.mxu0 0.0
    %2148 = vmatprep.subr.mxu0 0.0
    %2149 = vmatpush1.msra.mxu0 0.0
    %2150 = vmatprep.subr.mxu0 0.0
    %2151 = vmatpush1.msra.mxu0 0.0
    %2152 = vmatprep.subr.mxu0 0.0
    %2153 = vmatpush1.msra.mxu0 0.0
    %2154 = vmatprep.subr.mxu0 0.0
    %2155 = vmatpush1.msra.mxu0 0.0
    %2156 = vmatprep.subr.mxu0 0.0
    %2157 = vmatpush1.msra.mxu0 0.0
    %2158 = vmatprep.subr.mxu0 0.0
    %2159 = vmatpush1.msra.mxu0 0.0
    %2160 = vmatprep.subr.mxu0 0.0
    %2161 = vmatpush1.msra.mxu0 0.0
    %2162 = vmatprep.subr.mxu0 0.0
    %2163 = vmatpush1.msra.mxu0 0.0
    %2164 = vmatprep.subr.mxu0 0.0
    %2165 = vmatpush1.msra.mxu0 0.0
    %2166 = vmatprep.subr.mxu0 0.0
    %2167 = vmatpush1.msra.mxu0 0.0
    %2168 = vmatprep.subr.mxu0 0.0
    %2169 = vmatpush1.msra.mxu0 0.0
    %2170 = vmatprep.subr.mxu0 0.0
    %2171 = vmatpush1.msra.mxu0 0.0
    %2172 = vmatprep.subr.mxu0 0.0
    %2173 = vmatpush1.msra.mxu0 0.0
    %2174 = vmatprep.subr.mxu0 0.0
    %2175 = vmatpush1.msra.mxu0 0.0
    %2176 = vmatprep.subr.mxu0 0.0
    %2177 = vmatpush1.msra.mxu0 0.0
    %2178 = vmatprep.subr.mxu0 0.0
    %2179 = vmatpush1.msra.mxu0 0.0
    %2180 = vmatprep.mubr.f32.mxu0 0.0
    %2181 = vmatmul.mubr.f32.gmra.mrb[0].mxu0 %v2114
    %v2182 = vpop.f32.mrb[0].mxu0
    %v2183 = vadd.f32 0.0, %v2182
    %v2184 = vpop.f32.mrb[0].mxu0
    %2185 = vdwg.mxu0
    %v2187 = vsel %vm629, %v1656, 0
    %2189 = vmatprep.subr.mxu0 0.0
    %2190 = vmatpush1.msra.mxu0 %v1966
    %2191 = vmatprep.subr.mxu0 0.0
    %2192 = vmatpush1.msra.mxu0 0.0
    %2193 = vmatprep.subr.mxu0 0.0
    %2194 = vmatpush1.msra.mxu0 0.0
    %2195 = vmatprep.subr.mxu0 0.0
    %2196 = vmatpush1.msra.mxu0 0.0
    %2197 = vmatprep.subr.mxu0 0.0
    %2198 = vmatpush1.msra.mxu0 0.0
    %2199 = vmatprep.subr.mxu0 0.0
    %2200 = vmatpush1.msra.mxu0 0.0
    %2201 = vmatprep.subr.mxu0 0.0
    %2202 = vmatpush1.msra.mxu0 0.0
    %2203 = vmatprep.subr.mxu0 0.0
    %2204 = vmatpush1.msra.mxu0 0.0
    %2205 = vmatprep.subr.mxu0 0.0
    %2206 = vmatpush1.msra.mxu0 0.0
    %2207 = vmatprep.subr.mxu0 0.0
    %2208 = vmatpush1.msra.mxu0 0.0
    %2209 = vmatprep.subr.mxu0 0.0
    %2210 = vmatpush1.msra.mxu0 0.0
    %2211 = vmatprep.subr.mxu0 0.0
    %2212 = vmatpush1.msra.mxu0 0.0
    %2213 = vmatprep.subr.mxu0 0.0
    %2214 = vmatpush1.msra.mxu0 0.0
    %2215 = vmatprep.subr.mxu0 0.0
    %2216 = vmatpush1.msra.mxu0 0.0
    %2217 = vmatprep.subr.mxu0 0.0
    %2218 = vmatpush1.msra.mxu0 0.0
    %2219 = vmatprep.subr.mxu0 0.0
    %2220 = vmatpush1.msra.mxu0 0.0
    %2221 = vmatprep.subr.mxu0 0.0
    %2222 = vmatpush1.msra.mxu0 0.0
    %2223 = vmatprep.subr.mxu0 0.0
    %2224 = vmatpush1.msra.mxu0 0.0
    %2225 = vmatprep.subr.mxu0 0.0
    %2226 = vmatpush1.msra.mxu0 0.0
    %2227 = vmatprep.subr.mxu0 0.0
    %2228 = vmatpush1.msra.mxu0 0.0
    %2229 = vmatprep.subr.mxu0 0.0
    %2230 = vmatpush1.msra.mxu0 0.0
    %2231 = vmatprep.subr.mxu0 0.0
    %2232 = vmatpush1.msra.mxu0 0.0
    %2233 = vmatprep.subr.mxu0 0.0
    %2234 = vmatpush1.msra.mxu0 0.0
    %2235 = vmatprep.subr.mxu0 0.0
    %2236 = vmatpush1.msra.mxu0 0.0
    %2237 = vmatprep.subr.mxu0 0.0
    %2238 = vmatpush1.msra.mxu0 0.0
    %2239 = vmatprep.subr.mxu0 0.0
    %2240 = vmatpush1.msra.mxu0 0.0
    %2241 = vmatprep.subr.mxu0 0.0
    %2242 = vmatpush1.msra.mxu0 0.0
    %2243 = vmatprep.subr.mxu0 0.0
    %2244 = vmatpush1.msra.mxu0 0.0
    %2245 = vmatprep.subr.mxu0 0.0
    %2246 = vmatpush1.msra.mxu0 0.0
    %2247 = vmatprep.subr.mxu0 0.0
    %2248 = vmatpush1.msra.mxu0 0.0
    %2249 = vmatprep.subr.mxu0 0.0
    %2250 = vmatpush1.msra.mxu0 0.0
    %2251 = vmatprep.subr.mxu0 0.0
    %2252 = vmatpush1.msra.mxu0 0.0
    %2253 = vmatprep.mubr.f32.mxu0 0.0
    %2254 = vmatmul.mubr.f32.gmra.mrb[0].mxu0 %v2187
    %v2255 = vpop.f32.mrb[0].mxu0
    %v2256 = vadd.f32 0.0, %v2255
    %v2257 = vpop.f32.mrb[0].mxu0
    %2258 = vdwg.mxu0
    %v2260 = vsel %vm629, %v1732, 0
    %2262 = vmatprep.subr.mxu0 0.0
    %2263 = vmatpush1.msra.mxu0 %v1963
    %2264 = vmatprep.subr.mxu0 0.0
    %2265 = vmatpush1.msra.mxu0 0.0
    %2266 = vmatprep.subr.mxu0 0.0
    %2267 = vmatpush1.msra.mxu0 0.0
    %2268 = vmatprep.subr.mxu0 0.0
    %2269 = vmatpush1.msra.mxu0 0.0
    %2270 = vmatprep.subr.mxu0 0.0
    %2271 = vmatpush1.msra.mxu0 0.0
    %2272 = vmatprep.subr.mxu0 0.0
    %2273 = vmatpush1.msra.mxu0 0.0
    %2274 = vmatprep.subr.mxu0 0.0
    %2275 = vmatpush1.msra.mxu0 0.0
    %2276 = vmatprep.subr.mxu0 0.0
    %2277 = vmatpush1.msra.mxu0 0.0
    %2278 = vmatprep.subr.mxu0 0.0
    %2279 = vmatpush1.msra.mxu0 0.0
    %2280 = vmatprep.subr.mxu0 0.0
    %2281 = vmatpush1.msra.mxu0 0.0
    %2282 = vmatprep.subr.mxu0 0.0
    %2283 = vmatpush1.msra.mxu0 0.0
    %2284 = vmatprep.subr.mxu0 0.0
    %2285 = vmatpush1.msra.mxu0 0.0
    %2286 = vmatprep.subr.mxu0 0.0
    %2287 = vmatpush1.msra.mxu0 0.0
    %2288 = vmatprep.subr.mxu0 0.0
    %2289 = vmatpush1.msra.mxu0 0.0
    %2290 = vmatprep.subr.mxu0 0.0
    %2291 = vmatpush1.msra.mxu0 0.0
    %2292 = vmatprep.subr.mxu0 0.0
    %2293 = vmatpush1.msra.mxu0 0.0
    %2294 = vmatprep.subr.mxu0 0.0
    %2295 = vmatpush1.msra.mxu0 0.0
    %2296 = vmatprep.subr.mxu0 0.0
    %2297 = vmatpush1.msra.mxu0 0.0
    %2298 = vmatprep.subr.mxu0 0.0
    %2299 = vmatpush1.msra.mxu0 0.0
    %2300 = vmatprep.subr.mxu0 0.0
    %2301 = vmatpush1.msra.mxu0 0.0
    %2302 = vmatprep.subr.mxu0 0.0
    %2303 = vmatpush1.msra.mxu0 0.0
    %2304 = vmatprep.subr.mxu0 0.0
    %2305 = vmatpush1.msra.mxu0 0.0
    %2306 = vmatprep.subr.mxu0 0.0
    %2307 = vmatpush1.msra.mxu0 0.0
    %2308 = vmatprep.subr.mxu0 0.0
    %2309 = vmatpush1.msra.mxu0 0.0
    %2310 = vmatprep.subr.mxu0 0.0
    %2311 = vmatpush1.msra.mxu0 0.0
    %2312 = vmatprep.subr.mxu0 0.0
    %2313 = vmatpush1.msra.mxu0 0.0
    %2314 = vmatprep.subr.mxu0 0.0
    %2315 = vmatpush1.msra.mxu0 0.0
    %2316 = vmatprep.subr.mxu0 0.0
    %2317 = vmatpush1.msra.mxu0 0.0
    %2318 = vmatprep.subr.mxu0 0.0
    %2319 = vmatpush1.msra.mxu0 0.0
    %2320 = vmatprep.subr.mxu0 0.0
    %2321 = vmatpush1.msra.mxu0 0.0
    %2322 = vmatprep.subr.mxu0 0.0
    %2323 = vmatpush1.msra.mxu0 0.0
    %2324 = vmatprep.subr.mxu0 0.0
    %2325 = vmatpush1.msra.mxu0 0.0
    %2326 = vmatprep.mubr.f32.mxu0 0.0
    %2327 = vmatmul.mubr.f32.gmra.mrb[0].mxu0 %v2260
    %v2328 = vpop.f32.mrb[0].mxu0
    %v2329 = vadd.f32 0.0, %v2328
    %v2330 = vpop.f32.mrb[0].mxu0
    %2331 = vdwg.mxu0
    %v2333 = vsel %vm629, %v1808, 0
    %2335 = vmatprep.subr.mxu0 0.0
    %2336 = vmatpush1.msra.mxu0 %v1964
    %2337 = vmatprep.subr.mxu0 0.0
    %2338 = vmatpush1.msra.mxu0 0.0
    %2339 = vmatprep.subr.mxu0 0.0
    %2340 = vmatpush1.msra.mxu0 0.0
    %2341 = vmatprep.subr.mxu0 0.0
    %2342 = vmatpush1.msra.mxu0 0.0
    %2343 = vmatprep.subr.mxu0 0.0
    %2344 = vmatpush1.msra.mxu0 0.0
    %2345 = vmatprep.subr.mxu0 0.0
    %2346 = vmatpush1.msra.mxu0 0.0
    %2347 = vmatprep.subr.mxu0 0.0
    %2348 = vmatpush1.msra.mxu0 0.0
    %2349 = vmatprep.subr.mxu0 0.0
    %2350 = vmatpush1.msra.mxu0 0.0
    %2351 = vmatprep.subr.mxu0 0.0
    %2352 = vmatpush1.msra.mxu0 0.0
    %2353 = vmatprep.subr.mxu0 0.0
    %2354 = vmatpush1.msra.mxu0 0.0
    %2355 = vmatprep.subr.mxu0 0.0
    %2356 = vmatpush1.msra.mxu0 0.0
    %2357 = vmatprep.subr.mxu0 0.0
    %2358 = vmatpush1.msra.mxu0 0.0
    %2359 = vmatprep.subr.mxu0 0.0
    %2360 = vmatpush1.msra.mxu0 0.0
    %2361 = vmatprep.subr.mxu0 0.0
    %2362 = vmatpush1.msra.mxu0 0.0
    %2363 = vmatprep.subr.mxu0 0.0
    %2364 = vmatpush1.msra.mxu0 0.0
    %2365 = vmatprep.subr.mxu0 0.0
    %2366 = vmatpush1.msra.mxu0 0.0
    %2367 = vmatprep.subr.mxu0 0.0
    %2368 = vmatpush1.msra.mxu0 0.0
    %2369 = vmatprep.subr.mxu0 0.0
    %2370 = vmatpush1.msra.mxu0 0.0
    %2371 = vmatprep.subr.mxu0 0.0
    %2372 = vmatpush1.msra.mxu0 0.0
    %2373 = vmatprep.subr.mxu0 0.0
    %2374 = vmatpush1.msra.mxu0 0.0
    %2375 = vmatprep.subr.mxu0 0.0
    %2376 = vmatpush1.msra.mxu0 0.0
    %2377 = vmatprep.subr.mxu0 0.0
    %2378 = vmatpush1.msra.mxu0 0.0
    %2379 = vmatprep.subr.mxu0 0.0
    %2380 = vmatpush1.msra.mxu0 0.0
    %2381 = vmatprep.subr.mxu0 0.0
    %2382 = vmatpush1.msra.mxu0 0.0
    %2383 = vmatprep.subr.mxu0 0.0
    %2384 = vmatpush1.msra.mxu0 0.0
    %2385 = vmatprep.subr.mxu0 0.0
    %2386 = vmatpush1.msra.mxu0 0.0
    %2387 = vmatprep.subr.mxu0 0.0
    %2388 = vmatpush1.msra.mxu0 0.0
    %2389 = vmatprep.subr.mxu0 0.0
    %2390 = vmatpush1.msra.mxu0 0.0
    %2391 = vmatprep.subr.mxu0 0.0
    %2392 = vmatpush1.msra.mxu0 0.0
    %2393 = vmatprep.subr.mxu0 0.0
    %2394 = vmatpush1.msra.mxu0 0.0
    %2395 = vmatprep.subr.mxu0 0.0
    %2396 = vmatpush1.msra.mxu0 0.0
    %2397 = vmatprep.subr.mxu0 0.0
    %2398 = vmatpush1.msra.mxu0 0.0
    %2399 = vmatprep.mubr.f32.mxu0 0.0
    %2400 = vmatmul.mubr.f32.gmra.mrb[0].mxu0 %v2333
    %v2401 = vpop.f32.mrb[0].mxu0
    %v2402 = vadd.f32 0.0, %v2401
    %v2403 = vpop.f32.mrb[0].mxu0
    %2404 = vdwg.mxu0
    %v2406 = vsel %vm629, %v1884, 0
    %2408 = vmatprep.subr.mxu0 0.0
    %2409 = vmatpush1.msra.mxu0 %v1965
    %2410 = vmatprep.subr.mxu0 0.0
    %2411 = vmatpush1.msra.mxu0 0.0
    %2412 = vmatprep.subr.mxu0 0.0
    %2413 = vmatpush1.msra.mxu0 0.0
    %2414 = vmatprep.subr.mxu0 0.0
    %2415 = vmatpush1.msra.mxu0 0.0
    %2416 = vmatprep.subr.mxu0 0.0
    %2417 = vmatpush1.msra.mxu0 0.0
    %2418 = vmatprep.subr.mxu0 0.0
    %2419 = vmatpush1.msra.mxu0 0.0
    %2420 = vmatprep.subr.mxu0 0.0
    %2421 = vmatpush1.msra.mxu0 0.0
    %2422 = vmatprep.subr.mxu0 0.0
    %2423 = vmatpush1.msra.mxu0 0.0
    %2424 = vmatprep.subr.mxu0 0.0
    %2425 = vmatpush1.msra.mxu0 0.0
    %2426 = vmatprep.subr.mxu0 0.0
    %2427 = vmatpush1.msra.mxu0 0.0
    %2428 = vmatprep.subr.mxu0 0.0
    %2429 = vmatpush1.msra.mxu0 0.0
    %2430 = vmatprep.subr.mxu0 0.0
    %2431 = vmatpush1.msra.mxu0 0.0
    %2432 = vmatprep.subr.mxu0 0.0
    %2433 = vmatpush1.msra.mxu0 0.0
    %2434 = vmatprep.subr.mxu0 0.0
    %2435 = vmatpush1.msra.mxu0 0.0
    %2436 = vmatprep.subr.mxu0 0.0
    %2437 = vmatpush1.msra.mxu0 0.0
    %2438 = vmatprep.subr.mxu0 0.0
    %2439 = vmatpush1.msra.mxu0 0.0
    %2440 = vmatprep.subr.mxu0 0.0
    %2441 = vmatpush1.msra.mxu0 0.0
    %2442 = vmatprep.subr.mxu0 0.0
    %2443 = vmatpush1.msra.mxu0 0.0
    %2444 = vmatprep.subr.mxu0 0.0
    %2445 = vmatpush1.msra.mxu0 0.0
    %2446 = vmatprep.subr.mxu0 0.0
    %2447 = vmatpush1.msra.mxu0 0.0
    %2448 = vmatprep.subr.mxu0 0.0
    %2449 = vmatpush1.msra.mxu0 0.0
    %2450 = vmatprep.subr.mxu0 0.0
    %2451 = vmatpush1.msra.mxu0 0.0
    %2452 = vmatprep.subr.mxu0 0.0
    %2453 = vmatpush1.msra.mxu0 0.0
    %2454 = vmatprep.subr.mxu0 0.0
    %2455 = vmatpush1.msra.mxu0 0.0
    %2456 = vmatprep.subr.mxu0 0.0
    %2457 = vmatpush1.msra.mxu0 0.0
    %2458 = vmatprep.subr.mxu0 0.0
    %2459 = vmatpush1.msra.mxu0 0.0
    %2460 = vmatprep.subr.mxu0 0.0
    %2461 = vmatpush1.msra.mxu0 0.0
    %2462 = vmatprep.subr.mxu0 0.0
    %2463 = vmatpush1.msra.mxu0 0.0
    %2464 = vmatprep.subr.mxu0 0.0
    %2465 = vmatpush1.msra.mxu0 0.0
    %2466 = vmatprep.subr.mxu0 0.0
    %2467 = vmatpush1.msra.mxu0 0.0
    %2468 = vmatprep.subr.mxu0 0.0
    %2469 = vmatpush1.msra.mxu0 0.0
    %2470 = vmatprep.subr.mxu0 0.0
    %2471 = vmatpush1.msra.mxu0 0.0
    %2472 = vmatprep.mubr.f32.mxu0 0.0
    %2473 = vmatmul.mubr.f32.gmra.mrb[0].mxu0 %v2406
    %v2474 = vpop.f32.mrb[0].mxu0
    %v2475 = vadd.f32 0.0, %v2474
    %v2476 = vpop.f32.mrb[0].mxu0
    %2477 = vdwg.mxu0
    %v2479 = vsel %vm629, %v1960, 0
    %2481 = vmatprep.subr.mxu0 0.0
    %2482 = vmatpush1.msra.mxu0 %v1966
    %2483 = vmatprep.subr.mxu0 0.0
    %2484 = vmatpush1.msra.mxu0 0.0
    %2485 = vmatprep.subr.mxu0 0.0
    %2486 = vmatpush1.msra.mxu0 0.0
    %2487 = vmatprep.subr.mxu0 0.0
    %2488 = vmatpush1.msra.mxu0 0.0
    %2489 = vmatprep.subr.mxu0 0.0
    %2490 = vmatpush1.msra.mxu0 0.0
    %2491 = vmatprep.subr.mxu0 0.0
    %2492 = vmatpush1.msra.mxu0 0.0
    %2493 = vmatprep.subr.mxu0 0.0
    %2494 = vmatpush1.msra.mxu0 0.0
    %2495 = vmatprep.subr.mxu0 0.0
    %2496 = vmatpush1.msra.mxu0 0.0
    %2497 = vmatprep.subr.mxu0 0.0
    %2498 = vmatpush1.msra.mxu0 0.0
    %2499 = vmatprep.subr.mxu0 0.0
    %2500 = vmatpush1.msra.mxu0 0.0
    %2501 = vmatprep.subr.mxu0 0.0
    %2502 = vmatpush1.msra.mxu0 0.0
    %2503 = vmatprep.subr.mxu0 0.0
    %2504 = vmatpush1.msra.mxu0 0.0
    %2505 = vmatprep.subr.mxu0 0.0
    %2506 = vmatpush1.msra.mxu0 0.0
    %2507 = vmatprep.subr.mxu0 0.0
    %2508 = vmatpush1.msra.mxu0 0.0
    %2509 = vmatprep.subr.mxu0 0.0
    %2510 = vmatpush1.msra.mxu0 0.0
    %2511 = vmatprep.subr.mxu0 0.0
    %2512 = vmatpush1.msra.mxu0 0.0
    %2513 = vmatprep.subr.mxu0 0.0
    %2514 = vmatpush1.msra.mxu0 0.0
    %2515 = vmatprep.subr.mxu0 0.0
    %2516 = vmatpush1.msra.mxu0 0.0
    %2517 = vmatprep.subr.mxu0 0.0
    %2518 = vmatpush1.msra.mxu0 0.0
    %2519 = vmatprep.subr.mxu0 0.0
    %2520 = vmatpush1.msra.mxu0 0.0
    %2521 = vmatprep.subr.mxu0 0.0
    %2522 = vmatpush1.msra.mxu0 0.0
    %2523 = vmatprep.subr.mxu0 0.0
    %2524 = vmatpush1.msra.mxu0 0.0
    %2525 = vmatprep.subr.mxu0 0.0
    %2526 = vmatpush1.msra.mxu0 0.0
    %2527 = vmatprep.subr.mxu0 0.0
    %2528 = vmatpush1.msra.mxu0 0.0
    %2529 = vmatprep.subr.mxu0 0.0
    %2530 = vmatpush1.msra.mxu0 0.0
    %2531 = vmatprep.subr.mxu0 0.0
    %2532 = vmatpush1.msra.mxu0 0.0
    %2533 = vmatprep.subr.mxu0 0.0
    %2534 = vmatpush1.msra.mxu0 0.0
    %2535 = vmatprep.subr.mxu0 0.0
    %2536 = vmatpush1.msra.mxu0 0.0
    %2537 = vmatprep.subr.mxu0 0.0
    %2538 = vmatpush1.msra.mxu0 0.0
    %2539 = vmatprep.subr.mxu0 0.0
    %2540 = vmatpush1.msra.mxu0 0.0
    %2541 = vmatprep.subr.mxu0 0.0
    %2542 = vmatpush1.msra.mxu0 0.0
    %2543 = vmatprep.subr.mxu0 0.0
    %2544 = vmatpush1.msra.mxu0 0.0
    %2545 = vmatprep.mubr.f32.mxu0 0.0
    %2546 = vmatmul.mubr.f32.gmra.mrb[0].mxu0 %v2479
    %v2547 = vpop.f32.mrb[0].mxu0
    %v2548 = vadd.f32 0.0, %v2547
    %v2549 = vpop.f32.mrb[0].mxu0
    %2550 = vdwg.mxu0
    %v2551 = vsel %vm59, %v2037, 0.0
    %v2552 = vsel %vm59, %v2110, 0.0
    %v2553 = vadd.f32 %v2551, %v2552
    %v2554 = vsel %vm59, %v2183, 0.0
    %v2555 = vadd.f32 %v2553, %v2554
    %v2556 = vsel %vm59, %v2256, 0.0
    %v2557 = vadd.f32 %v2555, %v2556
    %v2558 = vsel %vm59, %v2329, 0.0
    %v2559 = vsel %vm59, %v2402, 0.0
    %v2560 = vadd.f32 %v2558, %v2559
    %v2561 = vsel %vm59, %v2475, 0.0
    %v2562 = vadd.f32 %v2560, %v2561
    %v2563 = vsel %vm59, %v2548, 0.0
    %v2564 = vadd.f32 %v2562, %v2563
    %v2565 = vadd.f32 %v2557, %v39
    %v2566 = vadd.f32 %v2564, %v40
    %v2567 = vld [vmem:[%s4] sm:$0x1]
    %v2568 = vld [vmem:[%s5] sm:$0x1]
    %v2569 = vsel %vm59, %v2565, 0.0
    %2570 = vadd.xlane.f32.xlu0 %v2569
    %v2571 = vpop.xlane.xlu0 %2570
    %v2572 = vsel %vm59, %v2566, 0.0
    %2573 = vadd.xlane.f32.xlu0 %v2572
    %v2574 = vpop.xlane.xlu0 %2573
    %v2575 = vrcp.pop 32.0
    %v2576 = vmul.f32 %v2571, %v2575
    %v2577 = vmul.f32 %v2574, %v2575
    %v2578 = vsub.f32 %v2565, %v2576
    %v2579 = vsub.f32 %v2566, %v2577
    %v2580 = vmul.f32 %v2578, %v2578
    %v2581 = vmul.f32 %v2579, %v2579
    %v2582 = vsel %vm59, %v2580, 0.0
    %2583 = vadd.xlane.f32.xlu0 %v2582
    %v2584 = vpop.xlane.xlu0 %2583
    %v2585 = vsel %vm59, %v2581, 0.0
    %2586 = vadd.xlane.f32.xlu0 %v2585
    %v2587 = vpop.xlane.xlu0 %2586
    %v2588 = vmul.f32 %v2584, %v2575
    %v2589 = vmul.f32 %v2587, %v2575
    %v2590 = vadd.f32 %v2588, 1e-05
    %v2591 = vadd.f32 %v2589, 1e-05
    %v2592 = vrsqrt.pop %v2590
    %v2593 = vrsqrt.pop %v2591
    %v2594 = vmul.f32 %v2578, %v2592
    %v2595 = vmul.f32 %v2579, %v2593
    %v2597 = vlaneseq
    %v2598 = vshrl.u32 %v2597, 7
    %v2599 = vsub.s32 0, %v2598
    %v2600 = vrot.slane %v2567, %v2599
    %v2602 = vmul.f32 %v2594, %v2600
    %v2603 = vmul.f32 %v2595, %v2600
    %v2605 = vlaneseq
    %v2606 = vshrl.u32 %v2605, 7
    %v2607 = vsub.s32 0, %v2606
    %v2608 = vrot.slane %v2568, %v2607
    %v2610 = vadd.f32 %v2602, %v2608
    %v2611 = vadd.f32 %v2603, %v2608
    %v2612 = vld [vmem:[%s6] sm:$0xff]
    %v2613 = vld [vmem:[%s6 + $0x8] sm:$0xff]
    %v2614 = vld [vmem:[%s6 + $0x10] sm:$0xff]
    %v2615 = vld [vmem:[%s6 + $0x18] sm:$0xff]
    %v2617 = vsel %vm59, %v2610, 0
    %v2620 = vsel %vm59, %v2611, 0
    %2622 = vmatprep.subr.mxu0 0.0
    %2623 = vmatpush1.msra.mxu0 %v2612
    %2624 = vmatprep.subr.mxu0 0.0
    %2625 = vmatpush1.msra.mxu0 %v2613
    %2626 = vmatprep.subr.mxu0 0.0
    %2627 = vmatpush1.msra.mxu0 %v2614
    %2628 = vmatprep.subr.mxu0 0.0
    %2629 = vmatpush1.msra.mxu0 %v2615
    %2630 = vmatprep.subr.mxu0 0.0
    %2631 = vmatpush1.msra.mxu0 0.0
    %2632 = vmatprep.subr.mxu0 0.0
    %2633 = vmatpush1.msra.mxu0 0.0
    %2634 = vmatprep.subr.mxu0 0.0
    %2635 = vmatpush1.msra.mxu0 0.0
    %2636 = vmatprep.subr.mxu0 0.0
    %2637 = vmatpush1.msra.mxu0 0.0
    %2638 = vmatprep.subr.mxu0 0.0
    %2639 = vmatpush1.msra.mxu0 0.0
    %2640 = vmatprep.subr.mxu0 0.0
    %2641 = vmatpush1.msra.mxu0 0.0
    %2642 = vmatprep.subr.mxu0 0.0
    %2643 = vmatpush1.msra.mxu0 0.0
    %2644 = vmatprep.subr.mxu0 0.0
    %2645 = vmatpush1.msra.mxu0 0.0
    %2646 = vmatprep.subr.mxu0 0.0
    %2647 = vmatpush1.msra.mxu0 0.0
    %2648 = vmatprep.subr.mxu0 0.0
    %2649 = vmatpush1.msra.mxu0 0.0
    %2650 = vmatprep.subr.mxu0 0.0
    %2651 = vmatpush1.msra.mxu0 0.0
    %2652 = vmatprep.subr.mxu0 0.0
    %2653 = vmatpush1.msra.mxu0 0.0
    %2654 = vmatprep.subr.mxu0 0.0
    %2655 = vmatpush1.msra.mxu0 0.0
    %2656 = vmatprep.subr.mxu0 0.0
    %2657 = vmatpush1.msra.mxu0 0.0
    %2658 = vmatprep.subr.mxu0 0.0
    %2659 = vmatpush1.msra.mxu0 0.0
    %2660 = vmatprep.subr.mxu0 0.0
    %2661 = vmatpush1.msra.mxu0 0.0
    %2662 = vmatprep.subr.mxu0 0.0
    %2663 = vmatpush1.msra.mxu0 0.0
    %2664 = vmatprep.subr.mxu0 0.0
    %2665 = vmatpush1.msra.mxu0 0.0
    %2666 = vmatprep.subr.mxu0 0.0
    %2667 = vmatpush1.msra.mxu0 0.0
    %2668 = vmatprep.subr.mxu0 0.0
    %2669 = vmatpush1.msra.mxu0 0.0
    %2670 = vmatprep.subr.mxu0 0.0
    %2671 = vmatpush1.msra.mxu0 0.0
    %2672 = vmatprep.subr.mxu0 0.0
    %2673 = vmatpush1.msra.mxu0 0.0
    %2674 = vmatprep.subr.mxu0 0.0
    %2675 = vmatpush1.msra.mxu0 0.0
    %2676 = vmatprep.subr.mxu0 0.0
    %2677 = vmatpush1.msra.mxu0 0.0
    %2678 = vmatprep.subr.mxu0 0.0
    %2679 = vmatpush1.msra.mxu0 0.0
    %2680 = vmatprep.subr.mxu0 0.0
    %2681 = vmatpush1.msra.mxu0 0.0
    %2682 = vmatprep.subr.mxu0 0.0
    %2683 = vmatpush1.msra.mxu0 0.0
    %2684 = vmatprep.subr.mxu0 0.0
    %2685 = vmatpush1.msra.mxu0 0.0
    %2686 = vmatprep.mubr.f32.mxu0 0.0
    %2687 = vmatmul.mubr.f32.gmra.mrb[0].mxu0 %v2617
    %v2688 = vpop.f32.mrb[0].mxu0
    %v2689 = vadd.f32 0.0, %v2688
    %v2690 = vpop.f32.mrb[0].mxu0
    %2691 = vmatprep.mubr.f32.mxu0 0.0
    %2692 = vmatmul.mubr.f32.gmra.mrb[0].mxu0 %v2620
    %v2693 = vpop.f32.mrb[0].mxu0
    %v2694 = vadd.f32 0.0, %v2693
    %v2695 = vpop.f32.mrb[0].mxu0
    %2696 = vdwg.mxu0
    %v2697 = vmax.f32 %v2689, 0.0
    %v2698 = vmax.f32 %v2694, 0.0
    %v2699 = vld [vmem:[%s7] sm:$0xff]
    %v2700 = vld [vmem:[%s7 + $0x8] sm:$0xff]
    %v2701 = vld [vmem:[%s7 + $0x10] sm:$0xff]
    %v2702 = vld [vmem:[%s7 + $0x18] sm:$0xff]
    %v2703 = vld [vmem:[%s7 + $0x20] sm:$0xff]
    %v2704 = vld [vmem:[%s7 + $0x28] sm:$0xff]
    %v2705 = vld [vmem:[%s7 + $0x30] sm:$0xff]
    %v2706 = vld [vmem:[%s7 + $0x38] sm:$0xff]
    %vm2707 = vcmask 523264
    %v2709 = vsel %vm2707, %v2697, 0
    %v2712 = vsel %vm2707, %v2698, 0
    %2714 = vmatprep.subr.mxu0 0.0
    %2715 = vmatpush1.msra.mxu0 %v2699
    %2716 = vmatprep.subr.mxu0 0.0
    %2717 = vmatpush1.msra.mxu0 %v2700
    %2718 = vmatprep.subr.mxu0 0.0
    %2719 = vmatpush1.msra.mxu0 %v2701
    %2720 = vmatprep.subr.mxu0 0.0
    %2721 = vmatpush1.msra.mxu0 %v2702
    %2722 = vmatprep.subr.mxu0 0.0
    %2723 = vmatpush1.msra.mxu0 %v2703
    %2724 = vmatprep.subr.mxu0 0.0
    %2725 = vmatpush1.msra.mxu0 %v2704
    %2726 = vmatprep.subr.mxu0 0.0
    %2727 = vmatpush1.msra.mxu0 %v2705
    %2728 = vmatprep.subr.mxu0 0.0
    %2729 = vmatpush1.msra.mxu0 %v2706
    %2730 = vmatprep.subr.mxu0 0.0
    %2731 = vmatpush1.msra.mxu0 0.0
    %2732 = vmatprep.subr.mxu0 0.0
    %2733 = vmatpush1.msra.mxu0 0.0
    %2734 = vmatprep.subr.mxu0 0.0
    %2735 = vmatpush1.msra.mxu0 0.0
    %2736 = vmatprep.subr.mxu0 0.0
    %2737 = vmatpush1.msra.mxu0 0.0
    %2738 = vmatprep.subr.mxu0 0.0
    %2739 = vmatpush1.msra.mxu0 0.0
    %2740 = vmatprep.subr.mxu0 0.0
    %2741 = vmatpush1.msra.mxu0 0.0
    %2742 = vmatprep.subr.mxu0 0.0
    %2743 = vmatpush1.msra.mxu0 0.0
    %2744 = vmatprep.subr.mxu0 0.0
    %2745 = vmatpush1.msra.mxu0 0.0
    %2746 = vmatprep.subr.mxu0 0.0
    %2747 = vmatpush1.msra.mxu0 0.0
    %2748 = vmatprep.subr.mxu0 0.0
    %2749 = vmatpush1.msra.mxu0 0.0
    %2750 = vmatprep.subr.mxu0 0.0
    %2751 = vmatpush1.msra.mxu0 0.0
    %2752 = vmatprep.subr.mxu0 0.0
    %2753 = vmatpush1.msra.mxu0 0.0
    %2754 = vmatprep.subr.mxu0 0.0
    %2755 = vmatpush1.msra.mxu0 0.0
    %2756 = vmatprep.subr.mxu0 0.0
    %2757 = vmatpush1.msra.mxu0 0.0
    %2758 = vmatprep.subr.mxu0 0.0
    %2759 = vmatpush1.msra.mxu0 0.0
    %2760 = vmatprep.subr.mxu0 0.0
    %2761 = vmatpush1.msra.mxu0 0.0
    %2762 = vmatprep.subr.mxu0 0.0
    %2763 = vmatpush1.msra.mxu0 0.0
    %2764 = vmatprep.subr.mxu0 0.0
    %2765 = vmatpush1.msra.mxu0 0.0
    %2766 = vmatprep.subr.mxu0 0.0
    %2767 = vmatpush1.msra.mxu0 0.0
    %2768 = vmatprep.subr.mxu0 0.0
    %2769 = vmatpush1.msra.mxu0 0.0
    %2770 = vmatprep.subr.mxu0 0.0
    %2771 = vmatpush1.msra.mxu0 0.0
    %2772 = vmatprep.subr.mxu0 0.0
    %2773 = vmatpush1.msra.mxu0 0.0
    %2774 = vmatprep.subr.mxu0 0.0
    %2775 = vmatpush1.msra.mxu0 0.0
    %2776 = vmatprep.subr.mxu0 0.0
    %2777 = vmatpush1.msra.mxu0 0.0
    %2778 = vmatprep.mubr.f32.mxu0 0.0
    %2779 = vmatmul.mubr.f32.gmra.mrb[0].mxu0 %v2709
    %v2780 = vpop.f32.mrb[0].mxu0
    %v2781 = vadd.f32 %v2610, %v2780
    %v2782 = vpop.f32.mrb[0].mxu0
    %2783 = vmatprep.mubr.f32.mxu0 0.0
    %2784 = vmatmul.mubr.f32.gmra.mrb[0].mxu0 %v2712
    %v2785 = vpop.f32.mrb[0].mxu0
    %v2786 = vadd.f32 %v2611, %v2785
    %v2787 = vpop.f32.mrb[0].mxu0
    %2788 = vdwg.mxu0
    %v2789 = vld [vmem:[%s8] sm:$0x1]
    %v2790 = vld [vmem:[%s9] sm:$0x1]
    %v2791 = vsel %vm59, %v2781, 0.0
    %2792 = vadd.xlane.f32.xlu0 %v2791
    %v2793 = vpop.xlane.xlu0 %2792
    %v2794 = vsel %vm59, %v2786, 0.0
    %2795 = vadd.xlane.f32.xlu0 %v2794
    %v2796 = vpop.xlane.xlu0 %2795
    %v2797 = vmul.f32 %v2793, %v2575
    %v2798 = vmul.f32 %v2796, %v2575
    %v2799 = vsub.f32 %v2781, %v2797
    %v2800 = vsub.f32 %v2786, %v2798
    %v2801 = vmul.f32 %v2799, %v2799
    %v2802 = vmul.f32 %v2800, %v2800
    %v2803 = vsel %vm59, %v2801, 0.0
    %2804 = vadd.xlane.f32.xlu0 %v2803
    %v2805 = vpop.xlane.xlu0 %2804
    %v2806 = vsel %vm59, %v2802, 0.0
    %2807 = vadd.xlane.f32.xlu0 %v2806
    %v2808 = vpop.xlane.xlu0 %2807
    %v2809 = vmul.f32 %v2805, %v2575
    %v2810 = vmul.f32 %v2808, %v2575
    %v2811 = vadd.f32 %v2809, 1e-05
    %v2812 = vadd.f32 %v2810, 1e-05
    %v2813 = vrsqrt.pop %v2811
    %v2814 = vrsqrt.pop %v2812
    %v2815 = vmul.f32 %v2799, %v2813
    %v2816 = vmul.f32 %v2800, %v2814
    %v2818 = vlaneseq
    %v2819 = vshrl.u32 %v2818, 7
    %v2820 = vsub.s32 0, %v2819
    %v2821 = vrot.slane %v2789, %v2820
    %v2823 = vmul.f32 %v2815, %v2821
    %v2824 = vmul.f32 %v2816, %v2821
    %v2826 = vlaneseq
    %v2827 = vshrl.u32 %v2826, 7
    %v2828 = vsub.s32 0, %v2827
    %v2829 = vrot.slane %v2790, %v2828
    %v2831 = vadd.f32 %v2823, %v2829
    %v2832 = vadd.f32 %v2824, %v2829
    %2833 = vst.msk [vmem:[#allocation2] sm:$0xff] %vm59, %v2831
    %2834 = vst.msk [vmem:[#allocation2 + $0x8] sm:$0xff] %vm59, %v2832
    // Predicated region
    $region42: #{tpu_custom_call.1} parent=1 // pred_check
      _
    $region43: #{tpu_custom_call.1} parent=1 // pred_check_branch
      %2836 = sbr.rel (0) target = $region45
    $region44: #{tpu_custom_call.1} parent=1 // pred_region
      %s2838 = ssub.s32 256, 256
      %2839 = vsyncadd [#allocation3], %s2838
      %s2840 = sshll.u32 [#allocation2], 4
      %s2841 = int_to_ptr.vmem [resolvable:$true] %s2840
      %2846 = dma.vmem_to_hbm [thread:$0]  %s2841, 256, %s10, [#allocation3], 128, 128, 8
    $region45: #{tpu_custom_call.1} parent=1 // pred_fallthru
      _
    // Predicated region
    $region46: #{tpu_custom_call.1} parent=1 // pred_check
      _
    $region47: #{tpu_custom_call.1} parent=1 // pred_check_branch
      %2848 = sbr.rel (0) target = $region49
    $region48: #{tpu_custom_call.1} parent=1 // pred_region
      %s2850 = ssub.s32 1024, 1024
      %2851 = vsyncadd [#allocation5], %s2850
      %s2852 = sshll.u32 [#allocation4], 4
      %s2853 = int_to_ptr.vmem [resolvable:$true] %s2852
      %2858 = dma.vmem_to_hbm [thread:$0]  %s2853, 1024, %s11, [#allocation5], 128, 128, 8
    $region49: #{tpu_custom_call.1} parent=1 // pred_fallthru
      _
    // Predicated region
    $region50: #{tpu_custom_call.1} parent=1 // pred_check
      _
    $region51: #{tpu_custom_call.1} parent=1 // pred_check_branch
      %2860 = sbr.rel (0) target = $region53
    $region52: #{tpu_custom_call.1} parent=1 // pred_region
      %2861 = dma.done [#allocation3], 256
    $region53: #{tpu_custom_call.1} parent=1 // pred_fallthru
      _
    // Predicated region
    $region54: #{tpu_custom_call.1} parent=1 // pred_check
      _
    $region55: #{tpu_custom_call.1} parent=1 // pred_check_branch
      %2863 = sbr.rel (0) target = $region57
    $region56: #{tpu_custom_call.1} parent=1 // pred_region
      %2864 = dma.done [#allocation5], 1024
    $region57: #{tpu_custom_call.1} parent=1 // pred_fallthru
      _
    %2865 = vsyncpa [#allocation3], 1
    %2866 = vsyncpa [#allocation5], 1

</llo_original>
